<compile_context>
chip_gen: v7x
topology: tpu7x:2x2x1
jax: 0.10.0
libtpu: 0.0.40
codegen_flags: <defaults>
</compile_context>

<pallas_src>
import functools

import jax
import jax.numpy as jnp
from jax import lax
from jax.experimental import pallas as pl
from jax.experimental.pallas import tpu as pltpu

LANE = 128


def _rup(x, m):
    return ((x + m - 1) // m) * m


def _pad2(a, rows, cols, value=0.0):
    return jnp.pad(a, ((0, rows - a.shape[0]), (0, cols - a.shape[1])),
                   constant_values=value)


# ----------------------------- Pallas kernel --------------------------------
def phenomnn_kernel(x_ref, w1t_ref, b1_ref, a_ref, dqs_ref, h_ab_ref, h_ag_ref,
                    h_d_ref, w2t_ref, b2_ref, out_ref,
                    y_buf, y0_buf, ybf_buf,
                    *, alpha, tm, n_pad, d_pad, a_resident):
    f32 = jnp.float32
    step = pl.program_id(0)            # 0 = init (fc0 + relu), 1..S = prop steps
    tile = pl.program_id(1)            # node row-tile index
    last = pl.num_programs(0) - 1
    row = pl.multiple_of(tile * tm, tm)

    @pl.when(step == 0)
    def _init():
        # fcs[0] + ReLU (dropout = identity at inference)
        y0 = jnp.maximum(
            jnp.dot(x_ref[...], w1t_ref[...], preferred_element_type=f32)
            + b1_ref[...], 0.0)
        y0_buf[pl.ds(row, tm), :] = y0
        y_buf[pl.ds(row, tm), :] = y0
        # half 0 of the bf16 mirror (read half of prop step 1)
        ybf_buf[pl.ds(row, tm), :] = y0.astype(jnp.bfloat16)

    @pl.when(step > 0)
    def _prop():
        rp = lax.rem(step - 1, 2)              # read half of the bf16 mirror
        wp = lax.rem(step, 2)                  # write half
        roff = pl.multiple_of(rp * n_pad, tm)
        woff = pl.multiple_of(wp * n_pad + row, tm)

        y_rows = y_buf[pl.ds(row, tm), :]          # f32 prev-step rows (this tile)
        y_bf = ybf_buf[pl.ds(roff, n_pad), :]      # bf16 prev-step full Y

        # one MXU pass for both adjacency operators: [A_b_tile; A_g_tile] @ Y
        a_tile = a_ref[tile] if a_resident else a_ref[0]        # (2*tm, n_pad) bf16
        az = jnp.dot(a_tile, y_bf, preferred_element_type=f32)  # (2*tm, d)
        ab_y = az[:tm]
        ag_y = az[tm:]

        # diag vectors: [d_beta; d_gamma; alpha/q] packed along the sublane axis
        db = dqs_ref[pl.ds(row, tm), :]
        dg = dqs_ref[pl.ds(pl.multiple_of(n_pad + row, tm), tm), :]
        aqi = dqs_ref[pl.ds(pl.multiple_of(2 * n_pad + row, tm), tm), :]

        # D-commute trick: diag(d)·Y @ H == diag(d)·(Y @ H)  -> one (d, 2d) matmul
        yd = jnp.dot(y_rows, h_d_ref[...], preferred_element_type=f32)  # (tm, 2d)
        y_hat = (jnp.dot(ab_y, h_ab_ref[...], preferred_element_type=f32)
                 + jnp.dot(ag_y, h_ag_ref[...], preferred_element_type=f32)
                 + db * yd[:, :d_pad] + dg * yd[:, d_pad:]
                 + y0_buf[pl.ds(row, tm), :])
        y_new = (1.0 - alpha) * y_rows + aqi * y_hat

        y_buf[pl.ds(row, tm), :] = y_new
        ybf_buf[pl.ds(woff, tm), :] = y_new.astype(jnp.bfloat16)

        @pl.when(step == last)
        def _final():
            # act_fn on conv output + fcs[-1]
            out_ref[...] = (jnp.dot(jnp.maximum(y_new, 0.0), w2t_ref[...],
                                    preferred_element_type=f32) + b2_ref[...])


# ------------------------------- wrapper -------------------------------------
def phenomnn_forward(x, params, adj, deg, *, lam0, lam1, alpha, num_steps,
                     tm=128, a_resident=None):
    f32 = jnp.float32
    n, nfeat = x.shape
    nhidden = params["w1"].shape[0]
    nclass = params["w2"].shape[0]
    assert num_steps >= 1

    n_pad = _rup(max(n, tm), tm)
    f_pad = _rup(nfeat, LANE)
    d_pad = _rup(nhidden, LANE)
    c_pad = _rup(nclass, LANE)
    num_tiles = n_pad // tm

    a_beta, a_gamma = adj
    d_beta, d_gamma, i_diag = deg

    # ---- loop-invariant prep done once in XLA (not per kernel iteration) ----
    x_p = _pad2(x.astype(f32), n_pad, f_pad)
    w1t = _pad2(params["w1"].T.astype(f32), f_pad, d_pad)   # pre-transposed [in,out]
    b1 = _pad2(params["b1"].astype(f32), 1, d_pad)
    w2t = _pad2(params["w2"].T.astype(f32), d_pad, c_pad)
    b2 = _pad2(params["b2"].astype(f32), 1, c_pad)

    # adjacency operators: pad, group per row tile as [A_beta_tile; A_gamma_tile],
    # cast to bf16 (in-kernel accumulation stays f32).
    ab_p = _pad2(a_beta.astype(f32), n_pad, n_pad)
    ag_p = _pad2(a_gamma.astype(f32), n_pad, n_pad)
    a_stack = jnp.concatenate(
        [ab_p.reshape(num_tiles, tm, n_pad),
         ag_p.reshape(num_tiles, tm, n_pad)], axis=1).astype(jnp.bfloat16)
    # TODO(synk): for N too large for VMEM residency, quantize a_stack with
    # per-tile scales (int8 on v5e/v6e, fp8 e4m3 on v7x) to halve the HBM stream.

    db = _pad2(d_beta.astype(f32), n_pad, 1)
    dg = _pad2(d_gamma.astype(f32), n_pad, 1)
    i_p = _pad2(i_diag.astype(f32), n_pad, 1, value=1.0)    # pad rows -> q = 1
    aqinv = alpha / (lam0 * db + lam1 * dg + i_p)           # alpha * diag(Q)^-1
    dqs = jnp.concatenate([db, dg, aqinv], axis=0)          # (3*n_pad, 1) resident

    # H blocks with lam0/lam1, signs and L_gamma = D_gamma - A_gamma folded in:
    #   Y_hat = AbY@H_ab + AgY@H_ag + d_b*(Y@H_db) + d_g*(Y@H_dg) + Y0
    h1 = params["h1"].astype(f32)
    h2 = params["h2"].astype(f32)
    eye = jnp.eye(nhidden, dtype=f32)
    h_ab = _pad2(lam0 * (h1 + h1.T), d_pad, d_pad)
    h_ag = _pad2(lam1 * (h2 + h2.T - eye), d_pad, d_pad)
    h_d = jnp.concatenate([_pad2(-lam0 * (h1 @ h1.T), d_pad, d_pad),
                           _pad2(lam1 * (eye - h2 @ h2.T), d_pad, d_pad)], axis=1)

    # ---- VMEM budget / A-residency heuristic (conservative: assumes the
    #      resident block may still be double-buffered) ----
    scratch_bytes = 12 * n_pad * d_pad              # f32 Y + f32 Y0 + bf16 mirror x2
    weights_bytes = (4 * (f_pad * d_pad + 4 * d_pad * d_pad + d_pad * c_pad
                          + d_pad + c_pad) + 3 * n_pad * LANE * 4)
    a_res_bytes = 2 * (4 * n_pad * n_pad)           # 2 bufs x bf16 [Ab;Ag]
    vmem_budget = 40 * 1024 * 1024                  # stays inside v7x's 64 MiB/TC
    if a_resident is None:
        a_resident = (scratch_bytes + weights_bytes + a_res_bytes) <= vmem_budget

    kernel = functools.partial(phenomnn_kernel, alpha=float(alpha), tm=tm,
                               n_pad=n_pad, d_pad=d_pad,
                               a_resident=bool(a_resident))

    if a_resident:
        # whole bf16 A stack lives in VMEM for the entire grid (single DMA).
        a_spec = pl.BlockSpec((num_tiles, 2 * tm, n_pad), lambda s, i: (0, 0, 0))
    else:
        # stream one stacked [A_beta; A_gamma] row tile per grid point; parked
        # on tile 0 during the init step so there is no wasted pass.
        a_spec = pl.BlockSpec((1, 2 * tm, n_pad),
                              lambda s, i: (i * jnp.minimum(s, 1), 0, 0))

    in_specs = [
        # X: only used at the init step; afterwards parked on tile 0.
        pl.BlockSpec((tm, f_pad), lambda s, i: (i * jnp.maximum(1 - s, 0), 0)),
        pl.BlockSpec((f_pad, d_pad), lambda s, i: (0, 0)),          # W1^T (resident)
        pl.BlockSpec((1, d_pad), lambda s, i: (0, 0)),              # b1
        a_spec,                                                     # [A_beta; A_gamma]
        pl.BlockSpec((3 * n_pad, 1), lambda s, i: (0, 0)),          # [d_b; d_g; a/q]
        pl.BlockSpec((d_pad, d_pad), lambda s, i: (0, 0)),          # H_ab
        pl.BlockSpec((d_pad, d_pad), lambda s, i: (0, 0)),          # H_ag
        pl.BlockSpec((d_pad, 2 * d_pad), lambda s, i: (0, 0)),      # [H_db | H_dg]
        pl.BlockSpec((d_pad, c_pad), lambda s, i: (0, 0)),          # W2^T
        pl.BlockSpec((1, c_pad), lambda s, i: (0, 0)),              # b2
    ]
    # Single (n_pad, c_pad) output; the output block is parked at tile 0 until
    # the final step, so no intermediate/garbage HBM writebacks happen.
    out_specs = pl.BlockSpec(
        (tm, c_pad), lambda s, i: (jnp.where(s == num_steps, i, 0), 0))

    out = pl.pallas_call(
        kernel,
        out_shape=jax.ShapeDtypeStruct((n_pad, c_pad), f32),
        grid_spec=pltpu.PrefetchScalarGridSpec(
            num_scalar_prefetch=0,
            grid=(num_steps + 1, num_tiles),
            in_specs=in_specs,
            out_specs=out_specs,
            scratch_shapes=[
                pltpu.VMEM((n_pad, d_pad), f32),                 # Y (f32, in place)
                pltpu.VMEM((n_pad, d_pad), f32),                 # Y0
                pltpu.VMEM((2 * n_pad, d_pad), jnp.bfloat16),    # bf16 Y mirror (2x)
            ],
        ),
        compiler_params=pltpu.CompilerParams(
            # Both grid axes carry sequential dependencies through the shared
            # VMEM Y state, so neither can be megacore-parallel as written.
            # TODO(synk): on v7x, shard the tile axis over the 2 TensorCores
            # (core_map) with a per-step bf16 Y exchange via VMEM_SHARED/CMEM.
            dimension_semantics=("arbitrary", "arbitrary"),
            vmem_limit_bytes=48 * 1024 * 1024,
        ),
    )(x_p, w1t, b1, a_stack, dqs, h_ab, h_ag, h_d, w2t, b2)

    return out[:n, :nclass]


# --------------------------- pure-JAX reference -------------------------------
def phenomnn_ref(x, params, adj, deg, *, lam0, lam1, alpha, num_steps):
    a_beta, a_gamma = adj
    d_beta, d_gamma, i_diag = deg
    y0 = jax.nn.relu(x @ params["w1"].T + params["b1"])
    q = lam0 * d_beta + lam1 * d_gamma + i_diag
    h1, h2 = params["h1"], params["h2"]
    y = y0
    for _ in range(num_steps):
        ab_y = a_beta @ y
        ag_y = a_gamma @ y
        db_y = d_beta * y
        dg_y = d_gamma * y
        term_beta = ab_y @ (h1 + h1.T) - db_y @ (h1 @ h1.T)
        term_gamma = (dg_y - ag_y) + ag_y @ (h2 + h2.T) - dg_y @ (h2 @ h2.T)
        y_hat = lam0 * term_beta + y0 + lam1 * term_gamma
        y = (1.0 - alpha) * y + alpha * (y_hat / q)
    y = jax.nn.relu(y)
    return y @ params["w2"].T + params["b2"]


# ---------------------------------- main --------------------------------------
if __name__ == "__main__":
    # Multi-tile shapes (n_pad = 384 -> 3 row tiles of 128) so the Y ping-pong /
    # tile-ordering path and both A paths (resident + streamed) are exercised.
    N, NFEAT, NHIDDEN, NCLASS = 300, 48, 64, 10
    LAM0, LAM1 = 1.0, 1.0
    ALPHA = 1.0 / (1.0 + LAM0 + LAM1)    # args.alp == 0 path
    PROP_STEP = 3

    key = jax.random.PRNGKey(0)
    ks = jax.random.split(key, 8)

    x = jax.random.normal(ks[0], (N, NFEAT), jnp.float32)

    # Symmetric non-negative adjacency-style operators + diagonal degree matrices.
    rb = jax.random.uniform(ks[1], (N, N), jnp.float32)
    a_beta = 0.02 * (rb + rb.T)
    rg = jax.random.uniform(ks[2], (N, N), jnp.float32)
    a_gamma = 0.02 * (rg + rg.T)
    d_beta = jnp.sum(a_beta, axis=1, keepdims=True)    # [N, 1]
    d_gamma = jnp.sum(a_gamma, axis=1, keepdims=True)  # [N, 1]
    i_diag = jnp.ones((N, 1), jnp.float32)

    # Deterministic synthetic parameters (shapes from the PyTorch __init__).
    params = {
        "w1": 0.1 * jax.random.normal(ks[3], (NHIDDEN, NFEAT), jnp.float32),
        "b1": 0.1 * jax.random.normal(ks[4], (1, NHIDDEN), jnp.float32),
        # H['beta'], H['gamma1']: N(0, 1/nhidden) + I  (notresidual=False branch)
        "h1": (1.0 / NHIDDEN) * jax.random.normal(ks[5], (NHIDDEN, NHIDDEN), jnp.float32)
              + jnp.eye(NHIDDEN, dtype=jnp.float32),
        "h2": (1.0 / NHIDDEN) * jax.random.normal(ks[6], (NHIDDEN, NHIDDEN), jnp.float32)
              + jnp.eye(NHIDDEN, dtype=jnp.float32),
        # TODO(synk): H['gamma2'] exists in __init__ but is unused when twoHgamma=False.
        "w2": 0.1 * jax.random.normal(ks[7], (NCLASS, NHIDDEN), jnp.float32),
        "b2": jnp.zeros((1, NCLASS), jnp.float32),
    }

    ref = phenomnn_ref(x, params, (a_beta, a_gamma), (d_beta, d_gamma, i_diag),
                       lam0=LAM0, lam1=LAM1, alpha=ALPHA, num_steps=PROP_STEP)

    # 1) VMEM-resident A path (default heuristic at this size).
    out_res = phenomnn_forward(x, params, (a_beta, a_gamma),
                               (d_beta, d_gamma, i_diag),
                               lam0=LAM0, lam1=LAM1, alpha=ALPHA,
                               num_steps=PROP_STEP, a_resident=True)
    out_res = jax.block_until_ready(out_res)
    assert out_res.shape == (N, NCLASS)
    assert jnp.allclose(out_res, ref, rtol=2e-2, atol=2e-2), "resident-A mismatch"

    # 2) Streamed A path (per-tile pipelined DMAs) — exercises the large-N route.
    out_str = phenomnn_forward(x, params, (a_beta, a_gamma),
                               (d_beta, d_gamma, i_diag),
                               lam0=LAM0, lam1=LAM1, alpha=ALPHA,
                               num_steps=PROP_STEP, a_resident=False)
    out_str = jax.block_until_ready(out_str)
    assert jnp.allclose(out_str, ref, rtol=2e-2, atol=2e-2), "streamed-A mismatch"

    print("KERNEL_OK")
</pallas_src>

<mosaic_0001>
module attributes {stable_mosaic.version = 11 : i64} {
  func.func @phenomnn_kernel(%arg0: i32, %arg1: i32, %arg2: memref<128x128xf32, #tpu.memory_space<vmem>>, %arg3: memref<128x128xf32, #tpu.memory_space<vmem>>, %arg4: memref<1x128xf32, #tpu.memory_space<vmem>>, %arg5: memref<3x256x384xbf16, #tpu.memory_space<vmem>>, %arg6: memref<1152x1xf32, #tpu.memory_space<vmem>>, %arg7: memref<128x128xf32, #tpu.memory_space<vmem>>, %arg8: memref<128x128xf32, #tpu.memory_space<vmem>>, %arg9: memref<128x256xf32, #tpu.memory_space<vmem>>, %arg10: memref<128x128xf32, #tpu.memory_space<vmem>>, %arg11: memref<1x128xf32, #tpu.memory_space<vmem>>, %arg12: memref<128x128xf32, #tpu.memory_space<vmem>>, %arg13: memref<384x128xf32, #tpu.memory_space<vmem>>, %arg14: memref<384x128xf32, #tpu.memory_space<vmem>>, %arg15: memref<768x128xbf16, #tpu.memory_space<vmem>>) attributes {dimension_semantics = [#tpu.dimension_semantics<arbitrary>, #tpu.dimension_semantics<arbitrary>], iteration_bounds = array<i64: 4, 3>, scalar_prefetch = 0 : i64, scratch_operands = 3 : i64, tpu.core_type = #tpu.core_type<tc>, window_params = [{transform_indices = @transform_0, window_bounds = array<i64: 128, 128>}, {pipeline_mode = #tpu.pipeline_mode<synchronous>, transform_indices = @transform_1, window_bounds = array<i64: 128, 128>}, {pipeline_mode = #tpu.pipeline_mode<synchronous>, transform_indices = @transform_2, window_bounds = array<i64: 1, 128>}, {pipeline_mode = #tpu.pipeline_mode<synchronous>, transform_indices = @transform_3, window_bounds = array<i64: 3, 256, 384>}, {pipeline_mode = #tpu.pipeline_mode<synchronous>, transform_indices = @transform_4, window_bounds = array<i64: 1152, 1>}, {pipeline_mode = #tpu.pipeline_mode<synchronous>, transform_indices = @transform_5, window_bounds = array<i64: 128, 128>}, {pipeline_mode = #tpu.pipeline_mode<synchronous>, transform_indices = @transform_6, window_bounds = array<i64: 128, 128>}, {pipeline_mode = #tpu.pipeline_mode<synchronous>, transform_indices = @transform_7, window_bounds = array<i64: 128, 256>}, {pipeline_mode = #tpu.pipeline_mode<synchronous>, transform_indices = @transform_8, window_bounds = array<i64: 128, 128>}, {pipeline_mode = #tpu.pipeline_mode<synchronous>, transform_indices = @transform_9, window_bounds = array<i64: 1, 128>}, {transform_indices = @transform_10, window_bounds = array<i64: 128, 128>}]} {
    %c128_i32 = arith.constant 128 : i32
    %0 = arith.muli %arg1, %c128_i32 : i32
    %1 = tpu.assume_multiple %0, 128 : i32
    %c0_i32 = arith.constant 0 : i32
    %2 = arith.cmpi eq, %arg0, %c0_i32 : i32
    %3 = arith.extui %2 : i1 to i32
    %c0_i32_0 = arith.constant 0 : i32
    %4 = arith.cmpi ne, %3, %c0_i32_0 : i32
    scf.if %4 {
      %c0 = arith.constant 0 : index
      %c0_3 = arith.constant 0 : index
      %8 = vector.load %arg2[%c0, %c0_3] : memref<128x128xf32, #tpu.memory_space<vmem>>, vector<128x128xf32>
      %c0_4 = arith.constant 0 : index
      %c0_5 = arith.constant 0 : index
      %9 = vector.load %arg3[%c0_4, %c0_5] : memref<128x128xf32, #tpu.memory_space<vmem>>, vector<128x128xf32>
      %cst = arith.constant dense<0.000000e+00> : vector<128x128xf32>
      %10 = tpu.matmul %8, %9, %cst {dimension_numbers = #tpu.dot_dimension_numbers<[1], [0], [0], [1], [0, 0, 1, 1], [], []>} : vector<128x128xf32>, vector<128x128xf32>, vector<128x128xf32> -> vector<128x128xf32>
      %c0_6 = arith.constant 0 : index
      %c0_7 = arith.constant 0 : index
      %11 = vector.load %arg4[%c0_6, %c0_7] : memref<1x128xf32, #tpu.memory_space<vmem>>, vector<1x128xf32>
      %12 = vector.broadcast %11 : vector<1x128xf32> to vector<128x128xf32>
      %13 = arith.addf %10, %12 : vector<128x128xf32>
      %cst_8 = arith.constant 0.000000e+00 : f32
      %14 = vector.broadcast %cst_8 : f32 to vector<128x128xf32>
      %15 = arith.maximumf %13, %14 : vector<128x128xf32>
      %16 = arith.index_cast %1 : i32 to index
      %c0_9 = arith.constant 0 : index
      %17 = vector.load %arg14[%16, %c0_9] : memref<384x128xf32, #tpu.memory_space<vmem>>, vector<128x128xf32>
      tpu.vector_store %arg14[%16, %c0_9], %15 {strides = array<i32>} : memref<384x128xf32, #tpu.memory_space<vmem>>, vector<128x128xf32>,
      %18 = arith.index_cast %1 : i32 to index
      %c0_10 = arith.constant 0 : index
      %19 = vector.load %arg13[%18, %c0_10] : memref<384x128xf32, #tpu.memory_space<vmem>>, vector<128x128xf32>
      tpu.vector_store %arg13[%18, %c0_10], %15 {strides = array<i32>} : memref<384x128xf32, #tpu.memory_space<vmem>>, vector<128x128xf32>,
      %20 = arith.truncf %15 : vector<128x128xf32> to vector<128x128xbf16>
      %21 = arith.index_cast %1 : i32 to index
      %c0_11 = arith.constant 0 : index
      %22 = vector.load %arg15[%21, %c0_11] : memref<768x128xbf16, #tpu.memory_space<vmem>>, vector<128x128xbf16>
      tpu.vector_store %arg15[%21, %c0_11], %20 {strides = array<i32>} : memref<768x128xbf16, #tpu.memory_space<vmem>>, vector<128x128xbf16>,
    } else {
    }
    %c0_i32_1 = arith.constant 0 : i32
    %5 = arith.cmpi sgt, %arg0, %c0_i32_1 : i32
    %6 = arith.extui %5 : i1 to i32
    %c0_i32_2 = arith.constant 0 : i32
    %7 = arith.cmpi ne, %6, %c0_i32_2 : i32
    scf.if %7 {
      %c1_i32 = arith.constant 1 : i32
      %8 = arith.subi %arg0, %c1_i32 : i32
      %c2_i32 = arith.constant 2 : i32
      %9 = arith.remsi %8, %c2_i32 : i32
      %c2_i32_3 = arith.constant 2 : i32
      %10 = arith.remsi %arg0, %c2_i32_3 : i32
      %c384_i32 = arith.constant 384 : i32
      %11 = arith.muli %9, %c384_i32 : i32
      %12 = tpu.assume_multiple %11, 128 : i32
      %c384_i32_4 = arith.constant 384 : i32
      %13 = arith.muli %10, %c384_i32_4 : i32
      %14 = arith.addi %13, %1 : i32
      %15 = tpu.assume_multiple %14, 128 : i32
      %16 = arith.index_cast %1 : i32 to index
      %c0 = arith.constant 0 : index
      %17 = vector.load %arg13[%16, %c0] : memref<384x128xf32, #tpu.memory_space<vmem>>, vector<128x128xf32>
      %18 = arith.index_cast %12 : i32 to index
      %c0_5 = arith.constant 0 : index
      %19 = vector.load %arg15[%18, %c0_5] : memref<768x128xbf16, #tpu.memory_space<vmem>>, vector<384x128xbf16>
      %20 = arith.index_cast %arg1 : i32 to index
      %c0_6 = arith.constant 0 : index
      %c0_7 = arith.constant 0 : index
      %21 = vector.load %arg5[%20, %c0_6, %c0_7] : memref<3x256x384xbf16, #tpu.memory_space<vmem>>, vector<1x256x384xbf16>
      %22 = vector.shape_cast %21 : vector<1x256x384xbf16> to vector<256x384xbf16>
      %cst = arith.constant dense<0.000000e+00> : vector<256x128xf32>
      %23 = tpu.matmul %22, %19, %cst {dimension_numbers = #tpu.dot_dimension_numbers<[1], [0], [0], [1], [0, 0, 1, 1], [], []>} : vector<256x384xbf16>, vector<384x128xbf16>, vector<256x128xf32> -> vector<256x128xf32>
      %24 = vector.extract_strided_slice %23 {offsets = [0, 0], sizes = [128, 128], strides = [1, 1]} : vector<256x128xf32> to vector<128x128xf32>
      %25 = vector.extract_strided_slice %23 {offsets = [128, 0], sizes = [128, 128], strides = [1, 1]} : vector<256x128xf32> to vector<128x128xf32>
      %26 = arith.index_cast %1 : i32 to index
      %c0_8 = arith.constant 0 : index
      %27 = vector.load %arg6[%26, %c0_8] : memref<1152x1xf32, #tpu.memory_space<vmem>>, vector<128x1xf32>
      %c384_i32_9 = arith.constant 384 : i32
      %28 = arith.addi %c384_i32_9, %1 : i32
      %29 = tpu.assume_multiple %28, 128 : i32
      %30 = arith.index_cast %29 : i32 to index
      %c0_10 = arith.constant 0 : index
      %31 = vector.load %arg6[%30, %c0_10] : memref<1152x1xf32, #tpu.memory_space<vmem>>, vector<128x1xf32>
      %c768_i32 = arith.constant 768 : i32
      %32 = arith.addi %c768_i32, %1 : i32
      %33 = tpu.assume_multiple %32, 128 : i32
      %34 = arith.index_cast %33 : i32 to index
      %c0_11 = arith.constant 0 : index
      %35 = vector.load %arg6[%34, %c0_11] : memref<1152x1xf32, #tpu.memory_space<vmem>>, vector<128x1xf32>
      %c0_12 = arith.constant 0 : index
      %c0_13 = arith.constant 0 : index
      %36 = vector.load %arg9[%c0_12, %c0_13] : memref<128x256xf32, #tpu.memory_space<vmem>>, vector<128x256xf32>
      %cst_14 = arith.constant dense<0.000000e+00> : vector<128x256xf32>
      %37 = tpu.matmul %17, %36, %cst_14 {dimension_numbers = #tpu.dot_dimension_numbers<[1], [0], [0], [1], [0, 0, 1, 1], [], []>} : vector<128x128xf32>, vector<128x256xf32>, vector<128x256xf32> -> vector<128x256xf32>
      %c0_15 = arith.constant 0 : index
      %c0_16 = arith.constant 0 : index
      %38 = vector.load %arg7[%c0_15, %c0_16] : memref<128x128xf32, #tpu.memory_space<vmem>>, vector<128x128xf32>
      %cst_17 = arith.constant dense<0.000000e+00> : vector<128x128xf32>
      %39 = tpu.matmul %24, %38, %cst_17 {dimension_numbers = #tpu.dot_dimension_numbers<[1], [0], [0], [1], [0, 0, 1, 1], [], []>} : vector<128x128xf32>, vector<128x128xf32>, vector<128x128xf32> -> vector<128x128xf32>
      %c0_18 = arith.constant 0 : index
      %c0_19 = arith.constant 0 : index
      %40 = vector.load %arg8[%c0_18, %c0_19] : memref<128x128xf32, #tpu.memory_space<vmem>>, vector<128x128xf32>
      %cst_20 = arith.constant dense<0.000000e+00> : vector<128x128xf32>
      %41 = tpu.matmul %25, %40, %cst_20 {dimension_numbers = #tpu.dot_dimension_numbers<[1], [0], [0], [1], [0, 0, 1, 1], [], []>} : vector<128x128xf32>, vector<128x128xf32>, vector<128x128xf32> -> vector<128x128xf32>
      %42 = arith.addf %39, %41 : vector<128x128xf32>
      %43 = vector.extract_strided_slice %37 {offsets = [0, 0], sizes = [128, 128], strides = [1, 1]} : vector<128x256xf32> to vector<128x128xf32>
      %44 = vector.broadcast %27 : vector<128x1xf32> to vector<128x128xf32>
      %45 = arith.mulf %44, %43 : vector<128x128xf32>
      %46 = arith.addf %42, %45 : vector<128x128xf32>
      %47 = vector.extract_strided_slice %37 {offsets = [0, 128], sizes = [128, 128], strides = [1, 1]} : vector<128x256xf32> to vector<128x128xf32>
      %48 = vector.broadcast %31 : vector<128x1xf32> to vector<128x128xf32>
      %49 = arith.mulf %48, %47 : vector<128x128xf32>
      %50 = arith.addf %46, %49 : vector<128x128xf32>
      %51 = arith.index_cast %1 : i32 to index
      %c0_21 = arith.constant 0 : index
      %52 = vector.load %arg14[%51, %c0_21] : memref<384x128xf32, #tpu.memory_space<vmem>>, vector<128x128xf32>
      %53 = arith.addf %50, %52 : vector<128x128xf32>
      %cst_22 = arith.constant 0.666666686 : f32
      %54 = vector.broadcast %cst_22 : f32 to vector<128x128xf32>
      %55 = arith.mulf %54, %17 : vector<128x128xf32>
      %56 = vector.broadcast %35 : vector<128x1xf32> to vector<128x128xf32>
      %57 = arith.mulf %56, %53 : vector<128x128xf32>
      %58 = arith.addf %55, %57 : vector<128x128xf32>
      %59 = arith.index_cast %1 : i32 to index
      %c0_23 = arith.constant 0 : index
      %60 = vector.load %arg13[%59, %c0_23] : memref<384x128xf32, #tpu.memory_space<vmem>>, vector<128x128xf32>
      tpu.vector_store %arg13[%59, %c0_23], %58 {strides = array<i32>} : memref<384x128xf32, #tpu.memory_space<vmem>>, vector<128x128xf32>,
      %61 = arith.truncf %58 : vector<128x128xf32> to vector<128x128xbf16>
      %62 = arith.index_cast %15 : i32 to index
      %c0_24 = arith.constant 0 : index
      %63 = vector.load %arg15[%62, %c0_24] : memref<768x128xbf16, #tpu.memory_space<vmem>>, vector<128x128xbf16>
      tpu.vector_store %arg15[%62, %c0_24], %61 {strides = array<i32>} : memref<768x128xbf16, #tpu.memory_space<vmem>>, vector<128x128xbf16>,
      %c3_i32 = arith.constant 3 : i32
      %64 = arith.cmpi eq, %arg0, %c3_i32 : i32
      %65 = arith.extui %64 : i1 to i32
      %c0_i32_25 = arith.constant 0 : i32
      %66 = arith.cmpi ne, %65, %c0_i32_25 : i32
      scf.if %66 {
        %cst_26 = arith.constant 0.000000e+00 : f32
        %67 = vector.broadcast %cst_26 : f32 to vector<128x128xf32>
        %68 = arith.maximumf %58, %67 : vector<128x128xf32>
        %c0_27 = arith.constant 0 : index
        %c0_28 = arith.constant 0 : index
        %69 = vector.load %arg10[%c0_27, %c0_28] : memref<128x128xf32, #tpu.memory_space<vmem>>, vector<128x128xf32>
        %cst_29 = arith.constant dense<0.000000e+00> : vector<128x128xf32>
        %70 = tpu.matmul %68, %69, %cst_29 {dimension_numbers = #tpu.dot_dimension_numbers<[1], [0], [0], [1], [0, 0, 1, 1], [], []>} : vector<128x128xf32>, vector<128x128xf32>, vector<128x128xf32> -> vector<128x128xf32>
        %c0_30 = arith.constant 0 : index
        %c0_31 = arith.constant 0 : index
        %71 = vector.load %arg11[%c0_30, %c0_31] : memref<1x128xf32, #tpu.memory_space<vmem>>, vector<1x128xf32>
        %72 = vector.broadcast %71 : vector<1x128xf32> to vector<128x128xf32>
        %73 = arith.addf %70, %72 : vector<128x128xf32>
        %c0_32 = arith.constant 0 : index
        %c0_33 = arith.constant 0 : index
        %74 = vector.load %arg12[%c0_32, %c0_33] : memref<128x128xf32, #tpu.memory_space<vmem>>, vector<128x128xf32>
        tpu.vector_store %arg12[%c0_32, %c0_33], %73 {strides = array<i32>} : memref<128x128xf32, #tpu.memory_space<vmem>>, vector<128x128xf32>,
      } else {
      }
    } else {
    }
    return
  }
  func.func @transform_0(%arg0: i32, %arg1: i32) -> (i32, i32) {
    %c1_i32 = arith.constant 1 : i32
    %0 = arith.subi %c1_i32, %arg0 : i32
    %c0_i32 = arith.constant 0 : i32
    %1 = arith.maxsi %0, %c0_i32 : i32
    %2 = arith.muli %arg1, %1 : i32
    %c0_i32_0 = arith.constant 0 : i32
    %c0_i32_1 = arith.constant 0 : i32
    return %2, %c0_i32_0 : i32, i32
  }
  func.func @transform_1(%arg0: i32, %arg1: i32) -> (i32, i32) {
    %c0_i32 = arith.constant 0 : i32
    %c0_i32_0 = arith.constant 0 : i32
    %c0_i32_1 = arith.constant 0 : i32
    return %c0_i32, %c0_i32_0 : i32, i32
  }
  func.func @transform_2(%arg0: i32, %arg1: i32) -> (i32, i32) {
    %c0_i32 = arith.constant 0 : i32
    %c0_i32_0 = arith.constant 0 : i32
    %c0_i32_1 = arith.constant 0 : i32
    return %c0_i32, %c0_i32_0 : i32, i32
  }
  func.func @transform_3(%arg0: i32, %arg1: i32) -> (i32, i32, i32) {
    %c0_i32 = arith.constant 0 : i32
    %c0_i32_0 = arith.constant 0 : i32
    %c0_i32_1 = arith.constant 0 : i32
    %c0_i32_2 = arith.constant 0 : i32
    return %c0_i32, %c0_i32_0, %c0_i32_1 : i32, i32, i32
  }
  func.func @transform_4(%arg0: i32, %arg1: i32) -> (i32, i32) {
    %c0_i32 = arith.constant 0 : i32
    %c0_i32_0 = arith.constant 0 : i32
    %c0_i32_1 = arith.constant 0 : i32
    return %c0_i32, %c0_i32_0 : i32, i32
  }
  func.func @transform_5(%arg0: i32, %arg1: i32) -> (i32, i32) {
    %c0_i32 = arith.constant 0 : i32
    %c0_i32_0 = arith.constant 0 : i32
    %c0_i32_1 = arith.constant 0 : i32
    return %c0_i32, %c0_i32_0 : i32, i32
  }
  func.func @transform_6(%arg0: i32, %arg1: i32) -> (i32, i32) {
    %c0_i32 = arith.constant 0 : i32
    %c0_i32_0 = arith.constant 0 : i32
    %c0_i32_1 = arith.constant 0 : i32
    return %c0_i32, %c0_i32_0 : i32, i32
  }
  func.func @transform_7(%arg0: i32, %arg1: i32) -> (i32, i32) {
    %c0_i32 = arith.constant 0 : i32
    %c0_i32_0 = arith.constant 0 : i32
    %c0_i32_1 = arith.constant 0 : i32
    return %c0_i32, %c0_i32_0 : i32, i32
  }
  func.func @transform_8(%arg0: i32, %arg1: i32) -> (i32, i32) {
    %c0_i32 = arith.constant 0 : i32
    %c0_i32_0 = arith.constant 0 : i32
    %c0_i32_1 = arith.constant 0 : i32
    return %c0_i32, %c0_i32_0 : i32, i32
  }
  func.func @transform_9(%arg0: i32, %arg1: i32) -> (i32, i32) {
    %c0_i32 = arith.constant 0 : i32
    %c0_i32_0 = arith.constant 0 : i32
    %c0_i32_1 = arith.constant 0 : i32
    return %c0_i32, %c0_i32_0 : i32, i32
  }
  func.func @transform_10(%arg0: i32, %arg1: i32) -> (i32, i32) {
    %c3_i32 = arith.constant 3 : i32
    %0 = arith.cmpi eq, %arg0, %c3_i32 : i32
    %c0_i32 = arith.constant 0 : i32
    %1 = arith.select %0, %arg1, %c0_i32 : i32
    %c0_i32_0 = arith.constant 0 : i32
    %c0_i32_1 = arith.constant 0 : i32
    return %1, %c0_i32_0 : i32, i32
  }
}

</mosaic_0001>

<llo_original>
// kernel: tpu_custom_call.1
$region0: #{tpu_custom_call.1}
  #allocation0 [shape = 'u32[]', space=smem, size = 0x4, offset = 0x4, fixed_abs, tag = 'smem constant byte address 0x4 - core index']
  #allocation1 [shape = 'u32[144,128]{1,0:T(1,128)}', space=vmem, size = 0x12000, scoped, tag = 'internal scratch']
  #allocation2 [shape = 'f32[384,128]{1,0:T(8,128)}', space=vmem, size = 0x30000, scoped, tag = 'scratch operand']
  #allocation3 [shape = 'f32[384,128]{1,0:T(8,128)}', space=vmem, size = 0x30000, scoped, tag = 'scratch operand']
  #allocation4 [shape = 'bf16[768,128]{1,0:T(16,128)(2,1)}', space=vmem, size = 0x30000, scoped, tag = 'scratch operand']
  %s0 = inlined_call_operand.hbm [shape: f32[384,128], index: 0, kind: input, shape index: {}]
  %s1 = inlined_call_operand.hbm [shape: f32[128,128], index: 1, kind: input, shape index: {}]
  %s2 = inlined_call_operand.vmem [shape: f32[1,128], index: 2, kind: input, shape index: {}]
  %s3 = inlined_call_operand.vmem [shape: bf16[3,256,384], index: 3, kind: input, shape index: {}]
  %s4 = inlined_call_operand.vmem [shape: f32[1152,1], index: 4, kind: input, shape index: {}]
  %s5 = inlined_call_operand.hbm [shape: f32[128,128], index: 5, kind: input, shape index: {}]
  %s6 = inlined_call_operand.hbm [shape: f32[128,128], index: 6, kind: input, shape index: {}]
  %s7 = inlined_call_operand.hbm [shape: f32[128,256], index: 7, kind: input, shape index: {}]
  %s8 = inlined_call_operand.hbm [shape: f32[128,128], index: 8, kind: input, shape index: {}]
  %s9 = inlined_call_operand.vmem [shape: f32[1,128], index: 9, kind: input, shape index: {}]
  %s10 = inlined_call_operand.hbm [shape: f32[384,128], index: 10, kind: output, shape index: {}]
  %s11 = sld [smem:[#allocation0]]
  $region109: #{tpu_custom_call.1} parent=0
    _
  %s13 = ssub.s32 1, %s11
  %s14 = scalar_select 0, %s13, %s11
  $region1: #{tpu_custom_call.1} parent=0
    #allocation5 [shape = 'u8[131072]{0}', space=vmem, size = 0x20000, scoped, tag = 'input window, operand 0']
    #allocation6 [shape = 's32[2]{0}', space=sflag, size = 0x8, scoped, tag = 'scoped memory for tpu_custom_call.1']
    #allocation7 [shape = 's32[2]{0}', space=sflag, size = 0x8, scoped, tag = 'scoped memory for tpu_custom_call.1']
    #allocation8 [shape = 'u8[65536]{0}', space=vmem, size = 0x10000, scoped, tag = 'input window, operand 1, single buffered']
    #allocation9 [shape = 's32[1]{0}', space=sflag, size = 0x4, scoped, tag = 'scoped memory for tpu_custom_call.1']
    #allocation10 [shape = 'u8[65536]{0}', space=vmem, size = 0x10000, scoped, tag = 'input window, operand 5, single buffered']
    #allocation11 [shape = 'u8[65536]{0}', space=vmem, size = 0x10000, scoped, tag = 'input window, operand 6, single buffered']
    #allocation12 [shape = 's32[1]{0}', space=sflag, size = 0x4, scoped, tag = 'scoped memory for tpu_custom_call.1']
    #allocation13 [shape = 'u8[131072]{0}', space=vmem, size = 0x20000, scoped, tag = 'input window, operand 7, single buffered']
    #allocation14 [shape = 'u8[65536]{0}', space=vmem, size = 0x10000, scoped, tag = 'input window, operand 8, single buffered']
    #allocation15 [shape = 's32[1]{0}', space=sflag, size = 0x4, scoped, tag = 'scoped memory for tpu_custom_call.1']
    #allocation16 [shape = 'u8[131072]{0}', space=vmem, size = 0x20000, scoped, tag = 'output window, operand 0']
    %15 = vsyncpa [#allocation6], 0
    %s16 = scalar_lea.sflag [#allocation6], 1
    %17 = vsyncpa %s16, 0
    %18 = vsyncpa [#allocation9], 0
    %19 = vsyncpa [#allocation12], 0
    %20 = vsyncpa [#allocation15], 0
    %21 = vsyncpa [#allocation7], 0
    %s22 = scalar_lea.sflag [#allocation7], 1
    %23 = vsyncpa %s22, 0
    loop: start=0, step=1, limit=14
    $region2: #{tpu_custom_call.1} parent=1 // loop_pre_header
      _
    $region3: #{tpu_custom_call.1} parent=1 // loop_header
      %s25 = sphi 0, %s29
      %p26 = scmp.ge.s32.totalorder %s25, 14
      %s32 = sphi 0, %s44
      %s33 = sphi 0, %s40
      %s34 = sphi 0, %s32
      %s35 = sphi 0, %s33
      %s36 = sphi 0, %s34
      %s37 = sphi 0, %s35
      %s55 = sphi 0, %s57
      %s58 = sphi 0, %s55
      %s59 = sphi 0, %s58
      %s75 = sphi 0, %s59
      %s79 = sphi 0, %s79
      %s81 = sphi 0, %s79
      %s82 = sphi 0, %s81
      %s96 = sphi 0, %s82
      %s100 = sphi 0, %s100
      %s102 = sphi 0, %s100
      %s103 = sphi 0, %s102
      %s117 = sphi 0, %s103
      %s121 = sphi 0, %s121
      %s123 = sphi 0, %s121
      %s124 = sphi 0, %s123
      %s138 = sphi 0, %s124
      %s142 = sphi 0, %s142
      %s144 = sphi 0, %s142
      %s145 = sphi 0, %s144
      %s159 = sphi 0, %s145
      %s163 = sphi 0, %s163
      %s165 = sphi 0, %s163
      %s166 = sphi 0, %s165
      %s180 = sphi 0, %s166
      %s184 = sphi 0, %s184
      %s186 = sphi 0, %s184
      %s187 = sphi 0, %s186
      %s201 = sphi 0, %s187
      %s205 = sphi 0, %s205
      %s207 = sphi 0, %s205
      %s208 = sphi 0, %s207
      %s222 = sphi 0, %s208
      %s226 = sphi 0, %s226
      %s228 = sphi 0, %s226
      %s229 = sphi 0, %s228
      %s243 = sphi 0, %s229
      %s247 = sphi 0, %s247
      %s249 = sphi 0, %s247
      %s250 = sphi 0, %s249
      %s264 = sphi 0, %s250
      %s274 = sphi 0, %s276
      %s277 = sphi 0, %s274
      %s278 = sphi 0, %s277
      %s294 = sphi 0, %s278
    $region4: #{tpu_custom_call.1} parent=1 // loop_header_branch
      %28 = sbr.rel (%p26) target = $region8
    $region5: #{tpu_custom_call.1} parent=1 // loop_body
      %s30 = ssub.s32 %s25, 1
      %s31 = ssub.s32 %s25, 2
      %s38 = sadd.s32 1, %s33
      %p39 = scmp.ge.s32.totalorder %s38, 3
      %s40 = scalar_select %p39, 0, %s38
      %s41 = sadd.s32 1, %s32
      %s42 = scalar_select %p39, %s41, %s32
      %p43 = scmp.ge.s32.totalorder %s42, 4
      %s44 = scalar_select %p43, 0, %s42
      %s45 = ssub.s32 1, %s32
      %p46 = scmp.gt.s32.totalorder %s45, 0
      %s47 = scalar_select %p46, %s45, 0
      %s48 = smul.u32 %s33, %s47
      %s49 = ssub.s32 1, %s44
      %p50 = scmp.gt.s32.totalorder %s49, 0
      %s51 = scalar_select %p50, %s49, 0
      %s52 = smul.u32 %s40, %s51
      %s53 = ssub.s32 %s48, %s52
      %p54 = scmp.eq.s32.totalorder %s53, 0
      %s56 = sadd.s32 %s55, 1
      %s57 = scalar_select %p54, %s55, %s56
      %p60 = pneg %p54
      %p61 = scmp.eq.s32.totalorder %s25, 11
      %p62 = por %p60, %p61
      %p63 = scmp.ne.s32.totalorder %s55, %s58
      %p64 = scmp.eq.s32.totalorder %s25, 0
      %p65 = por %p63, %p64
      %p66 = scmp.ne.s32.totalorder %s55, %s58
      %p67 = scmp.eq.s32.totalorder %s30, 11
      %p68 = por %p66, %p67
      %p69 = scmp.ne.s32.totalorder %s58, %s59
      %p70 = scmp.eq.s32.totalorder %s30, 0
      %p71 = por %p69, %p70
      %p72 = scmp.ne.s32.totalorder %s58, %s59
      %p73 = scmp.eq.s32.totalorder %s31, 11
      %p74 = por %p72, %p73
      %p76 = scmp.ne.s32.totalorder %s59, %s75
      %p77 = scmp.eq.s32.totalorder %s31, 0
      %p78 = por %p76, %p77
      %s80 = sadd.s32 %s79, 1
      %p83 = scmp.eq.s32.totalorder %s25, 11
      %p84 = scmp.ne.s32.totalorder %s79, %s81
      %p85 = scmp.eq.s32.totalorder %s25, 0
      %p86 = por %p84, %p85
      %p87 = scmp.ne.s32.totalorder %s79, %s81
      %p88 = scmp.eq.s32.totalorder %s30, 11
      %p89 = por %p87, %p88
      %p90 = scmp.ne.s32.totalorder %s81, %s82
      %p91 = scmp.eq.s32.totalorder %s30, 0
      %p92 = por %p90, %p91
      %p93 = scmp.ne.s32.totalorder %s81, %s82
      %p94 = scmp.eq.s32.totalorder %s31, 11
      %p95 = por %p93, %p94
      %p97 = scmp.ne.s32.totalorder %s82, %s96
      %p98 = scmp.eq.s32.totalorder %s31, 0
      %p99 = por %p97, %p98
      %s101 = sadd.s32 %s100, 1
      %p104 = scmp.eq.s32.totalorder %s25, 11
      %p105 = scmp.ne.s32.totalorder %s100, %s102
      %p106 = scmp.eq.s32.totalorder %s25, 0
      %p107 = por %p105, %p106
      %p108 = scmp.ne.s32.totalorder %s100, %s102
      %p109 = scmp.eq.s32.totalorder %s30, 11
      %p110 = por %p108, %p109
      %p111 = scmp.ne.s32.totalorder %s102, %s103
      %p112 = scmp.eq.s32.totalorder %s30, 0
      %p113 = por %p111, %p112
      %p114 = scmp.ne.s32.totalorder %s102, %s103
      %p115 = scmp.eq.s32.totalorder %s31, 11
      %p116 = por %p114, %p115
      %p118 = scmp.ne.s32.totalorder %s103, %s117
      %p119 = scmp.eq.s32.totalorder %s31, 0
      %p120 = por %p118, %p119
      %s122 = sadd.s32 %s121, 1
      %p125 = scmp.eq.s32.totalorder %s25, 11
      %p126 = scmp.ne.s32.totalorder %s121, %s123
      %p127 = scmp.eq.s32.totalorder %s25, 0
      %p128 = por %p126, %p127
      %p129 = scmp.ne.s32.totalorder %s121, %s123
      %p130 = scmp.eq.s32.totalorder %s30, 11
      %p131 = por %p129, %p130
      %p132 = scmp.ne.s32.totalorder %s123, %s124
      %p133 = scmp.eq.s32.totalorder %s30, 0
      %p134 = por %p132, %p133
      %p135 = scmp.ne.s32.totalorder %s123, %s124
      %p136 = scmp.eq.s32.totalorder %s31, 11
      %p137 = por %p135, %p136
      %p139 = scmp.ne.s32.totalorder %s124, %s138
      %p140 = scmp.eq.s32.totalorder %s31, 0
      %p141 = por %p139, %p140
      %s143 = sadd.s32 %s142, 1
      %p146 = scmp.eq.s32.totalorder %s25, 11
      %p147 = scmp.ne.s32.totalorder %s142, %s144
      %p148 = scmp.eq.s32.totalorder %s25, 0
      %p149 = por %p147, %p148
      %p150 = scmp.ne.s32.totalorder %s142, %s144
      %p151 = scmp.eq.s32.totalorder %s30, 11
      %p152 = por %p150, %p151
      %p153 = scmp.ne.s32.totalorder %s144, %s145
      %p154 = scmp.eq.s32.totalorder %s30, 0
      %p155 = por %p153, %p154
      %p156 = scmp.ne.s32.totalorder %s144, %s145
      %p157 = scmp.eq.s32.totalorder %s31, 11
      %p158 = por %p156, %p157
      %p160 = scmp.ne.s32.totalorder %s145, %s159
      %p161 = scmp.eq.s32.totalorder %s31, 0
      %p162 = por %p160, %p161
      %s164 = sadd.s32 %s163, 1
      %p167 = scmp.eq.s32.totalorder %s25, 11
      %p168 = scmp.ne.s32.totalorder %s163, %s165
      %p169 = scmp.eq.s32.totalorder %s25, 0
      %p170 = por %p168, %p169
      %p171 = scmp.ne.s32.totalorder %s163, %s165
      %p172 = scmp.eq.s32.totalorder %s30, 11
      %p173 = por %p171, %p172
      %p174 = scmp.ne.s32.totalorder %s165, %s166
      %p175 = scmp.eq.s32.totalorder %s30, 0
      %p176 = por %p174, %p175
      %p177 = scmp.ne.s32.totalorder %s165, %s166
      %p178 = scmp.eq.s32.totalorder %s31, 11
      %p179 = por %p177, %p178
      %p181 = scmp.ne.s32.totalorder %s166, %s180
      %p182 = scmp.eq.s32.totalorder %s31, 0
      %p183 = por %p181, %p182
      %s185 = sadd.s32 %s184, 1
      %p188 = scmp.eq.s32.totalorder %s25, 11
      %p189 = scmp.ne.s32.totalorder %s184, %s186
      %p190 = scmp.eq.s32.totalorder %s25, 0
      %p191 = por %p189, %p190
      %p192 = scmp.ne.s32.totalorder %s184, %s186
      %p193 = scmp.eq.s32.totalorder %s30, 11
      %p194 = por %p192, %p193
      %p195 = scmp.ne.s32.totalorder %s186, %s187
      %p196 = scmp.eq.s32.totalorder %s30, 0
      %p197 = por %p195, %p196
      %p198 = scmp.ne.s32.totalorder %s186, %s187
      %p199 = scmp.eq.s32.totalorder %s31, 11
      %p200 = por %p198, %p199
      %p202 = scmp.ne.s32.totalorder %s187, %s201
      %p203 = scmp.eq.s32.totalorder %s31, 0
      %p204 = por %p202, %p203
      %s206 = sadd.s32 %s205, 1
      %p209 = scmp.eq.s32.totalorder %s25, 11
      %p210 = scmp.ne.s32.totalorder %s205, %s207
      %p211 = scmp.eq.s32.totalorder %s25, 0
      %p212 = por %p210, %p211
      %p213 = scmp.ne.s32.totalorder %s205, %s207
      %p214 = scmp.eq.s32.totalorder %s30, 11
      %p215 = por %p213, %p214
      %p216 = scmp.ne.s32.totalorder %s207, %s208
      %p217 = scmp.eq.s32.totalorder %s30, 0
      %p218 = por %p216, %p217
      %p219 = scmp.ne.s32.totalorder %s207, %s208
      %p220 = scmp.eq.s32.totalorder %s31, 11
      %p221 = por %p219, %p220
      %p223 = scmp.ne.s32.totalorder %s208, %s222
      %p224 = scmp.eq.s32.totalorder %s31, 0
      %p225 = por %p223, %p224
      %s227 = sadd.s32 %s226, 1
      %p230 = scmp.eq.s32.totalorder %s25, 11
      %p231 = scmp.ne.s32.totalorder %s226, %s228
      %p232 = scmp.eq.s32.totalorder %s25, 0
      %p233 = por %p231, %p232
      %p234 = scmp.ne.s32.totalorder %s226, %s228
      %p235 = scmp.eq.s32.totalorder %s30, 11
      %p236 = por %p234, %p235
      %p237 = scmp.ne.s32.totalorder %s228, %s229
      %p238 = scmp.eq.s32.totalorder %s30, 0
      %p239 = por %p237, %p238
      %p240 = scmp.ne.s32.totalorder %s228, %s229
      %p241 = scmp.eq.s32.totalorder %s31, 11
      %p242 = por %p240, %p241
      %p244 = scmp.ne.s32.totalorder %s229, %s243
      %p245 = scmp.eq.s32.totalorder %s31, 0
      %p246 = por %p244, %p245
      %s248 = sadd.s32 %s247, 1
      %p251 = scmp.eq.s32.totalorder %s25, 11
      %p252 = scmp.ne.s32.totalorder %s247, %s249
      %p253 = scmp.eq.s32.totalorder %s25, 0
      %p254 = por %p252, %p253
      %p255 = scmp.ne.s32.totalorder %s247, %s249
      %p256 = scmp.eq.s32.totalorder %s30, 11
      %p257 = por %p255, %p256
      %p258 = scmp.ne.s32.totalorder %s249, %s250
      %p259 = scmp.eq.s32.totalorder %s30, 0
      %p260 = por %p258, %p259
      %p261 = scmp.ne.s32.totalorder %s249, %s250
      %p262 = scmp.eq.s32.totalorder %s31, 11
      %p263 = por %p261, %p262
      %p265 = scmp.ne.s32.totalorder %s250, %s264
      %p266 = scmp.eq.s32.totalorder %s31, 0
      %p267 = por %p265, %p266
      %p268 = scmp.eq.s32.totalorder %s32, 3
      %s269 = scalar_select %p268, %s33, 0
      %p270 = scmp.eq.s32.totalorder %s44, 3
      %s271 = scalar_select %p270, %s40, 0
      %s272 = ssub.s32 %s269, %s271
      %p273 = scmp.eq.s32.totalorder %s272, 0
      %s275 = sadd.s32 %s274, 1
      %s276 = scalar_select %p273, %s274, %s275
      %p279 = pneg %p273
      %p280 = scmp.eq.s32.totalorder %s25, 11
      %p281 = por %p279, %p280
      %p282 = scmp.ne.s32.totalorder %s274, %s277
      %p283 = scmp.eq.s32.totalorder %s25, 0
      %p284 = por %p282, %p283
      %p285 = scmp.ne.s32.totalorder %s274, %s277
      %p286 = scmp.eq.s32.totalorder %s30, 11
      %p287 = por %p285, %p286
      %p288 = scmp.ne.s32.totalorder %s277, %s278
      %p289 = scmp.eq.s32.totalorder %s30, 0
      %p290 = por %p288, %p289
      %p291 = scmp.ne.s32.totalorder %s277, %s278
      %p292 = scmp.eq.s32.totalorder %s31, 11
      %p293 = por %p291, %p292
      %p295 = scmp.ne.s32.totalorder %s278, %s294
      %p296 = scmp.eq.s32.totalorder %s31, 0
      %p297 = por %p295, %p296
      %p298 = scmp.le.s32.totalorder 1, %s25
      %p299 = scmp.lt.s32.totalorder %s25, 13
      %p300 = pnand %p298, %p299
      %p301 = pneg %p300
      // Predicated region
      $region9: #{tpu_custom_call.1} parent=5 // pred_check
        _
      $region10: #{tpu_custom_call.1} parent=5 // pred_check_branch
        %303 = sbr.rel (%p300) target = $region12
      $region11: #{tpu_custom_call.1} parent=5 // pred_region
        %s304 = ssub.s32 %s25, 1
        // Predicated region
        $region13: #{tpu_custom_call.1} parent=11 // pred_check
          %p305 = pneg %p92
        $region14: #{tpu_custom_call.1} parent=11 // pred_check_branch
          %307 = sbr.rel (%p305) target = $region16
        $region15: #{tpu_custom_call.1} parent=11 // pred_region
          %s309 = ssub.s32 2048, 2048
          %310 = vsyncadd [#allocation9], %s309
          %s311 = sshll.u32 [#allocation8], 4
          %s312 = int_to_ptr.vmem [resolvable:$true] %s311
          %317 = dma.hbm_to_vmem [thread:$0]  %s1, 2048, %s312, [#allocation9], 128, 128, 8
        $region16: #{tpu_custom_call.1} parent=11 // pred_fallthru
          _
        // Predicated region
        $region17: #{tpu_custom_call.1} parent=11 // pred_check
          %p318 = pneg %p113
        $region18: #{tpu_custom_call.1} parent=11 // pred_check_branch
          %320 = sbr.rel (%p318) target = $region20
        $region19: #{tpu_custom_call.1} parent=11 // pred_region
          _
        $region20: #{tpu_custom_call.1} parent=11 // pred_fallthru
          _
        // Predicated region
        $region21: #{tpu_custom_call.1} parent=11 // pred_check
          %p321 = pneg %p134
        $region22: #{tpu_custom_call.1} parent=11 // pred_check_branch
          %323 = sbr.rel (%p321) target = $region24
        $region23: #{tpu_custom_call.1} parent=11 // pred_region
          _
        $region24: #{tpu_custom_call.1} parent=11 // pred_fallthru
          _
        // Predicated region
        $region25: #{tpu_custom_call.1} parent=11 // pred_check
          %p324 = pneg %p155
        $region26: #{tpu_custom_call.1} parent=11 // pred_check_branch
          %326 = sbr.rel (%p324) target = $region28
        $region27: #{tpu_custom_call.1} parent=11 // pred_region
          _
        $region28: #{tpu_custom_call.1} parent=11 // pred_fallthru
          _
        // Predicated region
        $region29: #{tpu_custom_call.1} parent=11 // pred_check
          %p327 = pneg %p176
        $region30: #{tpu_custom_call.1} parent=11 // pred_check_branch
          %329 = sbr.rel (%p327) target = $region32
        $region31: #{tpu_custom_call.1} parent=11 // pred_region
          %s331 = ssub.s32 2048, 2048
          %332 = vsyncadd [#allocation9], %s331
          %s333 = sshll.u32 [#allocation10], 4
          %s334 = int_to_ptr.vmem [resolvable:$true] %s333
          %339 = dma.hbm_to_vmem [thread:$0]  %s5, 2048, %s334, [#allocation9], 128, 128, 8
        $region32: #{tpu_custom_call.1} parent=11 // pred_fallthru
          _
        // Predicated region
        $region33: #{tpu_custom_call.1} parent=11 // pred_check
          %p340 = pneg %p197
        $region34: #{tpu_custom_call.1} parent=11 // pred_check_branch
          %342 = sbr.rel (%p340) target = $region36
        $region35: #{tpu_custom_call.1} parent=11 // pred_region
          %s344 = ssub.s32 2048, 2048
          %345 = vsyncadd [#allocation12], %s344
          %s346 = sshll.u32 [#allocation11], 4
          %s347 = int_to_ptr.vmem [resolvable:$true] %s346
          %352 = dma.hbm_to_vmem [thread:$0]  %s6, 2048, %s347, [#allocation12], 128, 128, 8
        $region36: #{tpu_custom_call.1} parent=11 // pred_fallthru
          _
        // Predicated region
        $region37: #{tpu_custom_call.1} parent=11 // pred_check
          %p353 = pneg %p218
        $region38: #{tpu_custom_call.1} parent=11 // pred_check_branch
          %355 = sbr.rel (%p353) target = $region40
        $region39: #{tpu_custom_call.1} parent=11 // pred_region
          %s357 = ssub.s32 4096, 4096
          %358 = vsyncadd [#allocation12], %s357
          %s359 = sshll.u32 [#allocation13], 4
          %s360 = int_to_ptr.vmem [resolvable:$true] %s359
          %365 = dma.hbm_to_vmem [thread:$0]  %s7, 4096, %s360, [#allocation12], 256, 256, 16
        $region40: #{tpu_custom_call.1} parent=11 // pred_fallthru
          _
        // Predicated region
        $region41: #{tpu_custom_call.1} parent=11 // pred_check
          %p366 = pneg %p239
        $region42: #{tpu_custom_call.1} parent=11 // pred_check_branch
          %368 = sbr.rel (%p366) target = $region44
        $region43: #{tpu_custom_call.1} parent=11 // pred_region
          %s370 = ssub.s32 2048, 2048
          %371 = vsyncadd [#allocation15], %s370
          %s372 = sshll.u32 [#allocation14], 4
          %s373 = int_to_ptr.vmem [resolvable:$true] %s372
          %378 = dma.hbm_to_vmem [thread:$0]  %s8, 2048, %s373, [#allocation15], 128, 128, 8
        $region44: #{tpu_custom_call.1} parent=11 // pred_fallthru
          _
        // Predicated region
        $region45: #{tpu_custom_call.1} parent=11 // pred_check
          %p379 = pneg %p260
        $region46: #{tpu_custom_call.1} parent=11 // pred_check_branch
          %381 = sbr.rel (%p379) target = $region48
        $region47: #{tpu_custom_call.1} parent=11 // pred_region
          _
        $region48: #{tpu_custom_call.1} parent=11 // pred_fallthru
          _
      $region12: #{tpu_custom_call.1} parent=5 // pred_fallthru
        _
      %p382 = scmp.lt.s32.totalorder %s25, 12
      // Predicated region
      $region49: #{tpu_custom_call.1} parent=5 // pred_check
        %p383 = pneg %p382
      $region50: #{tpu_custom_call.1} parent=5 // pred_check_branch
        %385 = sbr.rel (%p383) target = $region52
      $region51: #{tpu_custom_call.1} parent=5 // pred_region
        // Predicated region
        $region53: #{tpu_custom_call.1} parent=51 // pred_check
          %p386 = pneg %p65
        $region54: #{tpu_custom_call.1} parent=51 // pred_check_branch
          %388 = sbr.rel (%p386) target = $region56
        $region55: #{tpu_custom_call.1} parent=51 // pred_region
          %s389 = sand.u32 %s55, 1
          %s390 = scalar_lea.sflag [#allocation6], %s389
          %s391 = sand.u32 %s55, 1
          %s392 = smul.addr %s391, 128
          %s393 = scalar_lea.vmem [#allocation5], %s392
          %s394 = ssub.s32 1, %s32
          %p395 = scmp.gt.s32.totalorder %s394, 0
          %s396 = scalar_select %p395, %s394, 0
          %s397 = smul.u32 %s33, %s396
          %s398 = smul.u32 16, %s397
          %s400 = ssub.s32 2048, 2048
          %401 = vsyncadd %s390, %s400
          %s402 = smul.addr %s398, 128
          %s403 = scalar_lea.hbm %s0, %s402
          %s404 = sshll.u32 %s393, 4
          %s405 = int_to_ptr.vmem [resolvable:$true] %s404
          %410 = dma.hbm_to_vmem [thread:$0]  %s403, 2048, %s405, %s390, 128, 128, 8
        $region56: #{tpu_custom_call.1} parent=51 // pred_fallthru
          _
      $region52: #{tpu_custom_call.1} parent=5 // pred_fallthru
        _
      %p411 = scmp.le.s32.totalorder 1, %s25
      %p412 = scmp.lt.s32.totalorder %s25, 13
      %p413 = pnand %p411, %p412
      %p414 = pneg %p413
      // Predicated region
      $region57: #{tpu_custom_call.1} parent=5 // pred_check
        _
      $region58: #{tpu_custom_call.1} parent=5 // pred_check_branch
        %416 = sbr.rel (%p413) target = $region60
      $region59: #{tpu_custom_call.1} parent=5 // pred_region
        %s417 = ssub.s32 %s25, 1
        %s418 = sand.u32 %s58, 1
        %s419 = scalar_lea.sflag [#allocation6], %s418
        %s420 = sand.u32 %s58, 1
        %s421 = smul.addr %s420, 128
        %s422 = scalar_lea.vmem [#allocation5], %s421
        // Predicated region
        $region61: #{tpu_custom_call.1} parent=59 // pred_check
          %p423 = pneg %p71
        $region62: #{tpu_custom_call.1} parent=59 // pred_check_branch
          %425 = sbr.rel (%p423) target = $region64
        $region63: #{tpu_custom_call.1} parent=59 // pred_region
          %426 = dma.done %s419, 2048
        $region64: #{tpu_custom_call.1} parent=59 // pred_fallthru
          _
        // Predicated region
        $region65: #{tpu_custom_call.1} parent=59 // pred_check
          %p427 = pneg %p92
        $region66: #{tpu_custom_call.1} parent=59 // pred_check_branch
          %429 = sbr.rel (%p427) target = $region68
        $region67: #{tpu_custom_call.1} parent=59 // pred_region
          %430 = dma.done [#allocation9], 2048
        $region68: #{tpu_custom_call.1} parent=59 // pred_fallthru
          _
        // Predicated region
        $region69: #{tpu_custom_call.1} parent=59 // pred_check
          %p431 = pneg %p176
        $region70: #{tpu_custom_call.1} parent=59 // pred_check_branch
          %433 = sbr.rel (%p431) target = $region72
        $region71: #{tpu_custom_call.1} parent=59 // pred_region
          %434 = dma.done [#allocation9], 2048
        $region72: #{tpu_custom_call.1} parent=59 // pred_fallthru
          _
        // Predicated region
        $region73: #{tpu_custom_call.1} parent=59 // pred_check
          %p435 = pneg %p197
        $region74: #{tpu_custom_call.1} parent=59 // pred_check_branch
          %437 = sbr.rel (%p435) target = $region76
        $region75: #{tpu_custom_call.1} parent=59 // pred_region
          %438 = dma.done [#allocation12], 2048
        $region76: #{tpu_custom_call.1} parent=59 // pred_fallthru
          _
        // Predicated region
        $region77: #{tpu_custom_call.1} parent=59 // pred_check
          %p439 = pneg %p218
        $region78: #{tpu_custom_call.1} parent=59 // pred_check_branch
          %441 = sbr.rel (%p439) target = $region80
        $region79: #{tpu_custom_call.1} parent=59 // pred_region
          %442 = dma.done [#allocation12], 4096
        $region80: #{tpu_custom_call.1} parent=59 // pred_fallthru
          _
        // Predicated region
        $region81: #{tpu_custom_call.1} parent=59 // pred_check
          %p443 = pneg %p239
        $region82: #{tpu_custom_call.1} parent=59 // pred_check_branch
          %445 = sbr.rel (%p443) target = $region84
        $region83: #{tpu_custom_call.1} parent=59 // pred_region
          %446 = dma.done [#allocation15], 2048
        $region84: #{tpu_custom_call.1} parent=59 // pred_fallthru
          _
        %s447 = sand.u32 %s58, 1
        %s448 = scalar_lea.sflag [#allocation6], %s447
        %s449 = sand.u32 %s58, 1
        %s450 = smul.addr %s449, 128
        %s451 = scalar_lea.vmem [#allocation5], %s450
        %p452 = pneg %p71
        %p453 = pneg %p68
        %p454 = pneg %p92
        %p455 = pneg %p89
        %p456 = pneg %p113
        %p457 = pneg %p110
        %p458 = pneg %p134
        %p459 = pneg %p131
        %p460 = pneg %p155
        %p461 = pneg %p152
        %p462 = pneg %p176
        %p463 = pneg %p173
        %p464 = pneg %p197
        %p465 = pneg %p194
        %p466 = pneg %p218
        %p467 = pneg %p215
        %p468 = pneg %p239
        %p469 = pneg %p236
        %p470 = pneg %p260
        %p471 = pneg %p257
        %p472 = pneg %p290
        %p473 = pneg %p287
        %s474 = sand.u32 %s277, 1
        %s475 = scalar_lea.sflag [#allocation7], %s474
        %s476 = sand.u32 %s277, 1
        %s477 = smul.addr %s476, 128
        %s478 = scalar_lea.vmem [#allocation16], %s477
        %s479 = ssub.s32 1, %s34
        %p480 = scmp.gt.s32.totalorder %s479, 0
        %s481 = scalar_select %p480, %s479, 0
        %s482 = smul.u32 %s35, %s481
        %s483 = smul.u32 16, %s482
        %p484 = scmp.eq.s32.totalorder %s34, 3
        %s485 = scalar_select %p484, %s35, 0
        %s486 = smul.u32 16, %s485
        %s488 = smul.u32 %s35, 128
        %p489 = scmp.eq.s32.totalorder %s34, 0
        // Predicated region
        $region85: #{tpu_custom_call.1} parent=59 // pred_check
          %p490 = pneg %p489
        $region86: #{tpu_custom_call.1} parent=59 // pred_check_branch
          %492 = sbr.rel (%p490) target = $region88
        $region87: #{tpu_custom_call.1} parent=59 // pred_region
          %v493 = vld [vmem:[%s422] sm:$0xff]
          %v494 = vld [vmem:[%s422 + $0x8] sm:$0xff]
          %v495 = vld [vmem:[%s422 + $0x10] sm:$0xff]
          %v496 = vld [vmem:[%s422 + $0x18] sm:$0xff]
          %v497 = vld [vmem:[%s422 + $0x20] sm:$0xff]
          %v498 = vld [vmem:[%s422 + $0x28] sm:$0xff]
          %v499 = vld [vmem:[%s422 + $0x30] sm:$0xff]
          %v500 = vld [vmem:[%s422 + $0x38] sm:$0xff]
          %v501 = vld [vmem:[%s422 + $0x40] sm:$0xff]
          %v502 = vld [vmem:[%s422 + $0x48] sm:$0xff]
          %v503 = vld [vmem:[%s422 + $0x50] sm:$0xff]
          %v504 = vld [vmem:[%s422 + $0x58] sm:$0xff]
          %v505 = vld [vmem:[%s422 + $0x60] sm:$0xff]
          %v506 = vld [vmem:[%s422 + $0x68] sm:$0xff]
          %v507 = vld [vmem:[%s422 + $0x70] sm:$0xff]
          %v508 = vld [vmem:[%s422 + $0x78] sm:$0xff]
          %v509 = vld [vmem:[#allocation8] sm:$0xff]
          %v510 = vld [vmem:[#allocation8 + $0x8] sm:$0xff]
          %v511 = vld [vmem:[#allocation8 + $0x10] sm:$0xff]
          %v512 = vld [vmem:[#allocation8 + $0x18] sm:$0xff]
          %v513 = vld [vmem:[#allocation8 + $0x20] sm:$0xff]
          %v514 = vld [vmem:[#allocation8 + $0x28] sm:$0xff]
          %v515 = vld [vmem:[#allocation8 + $0x30] sm:$0xff]
          %v516 = vld [vmem:[#allocation8 + $0x38] sm:$0xff]
          %v517 = vld [vmem:[#allocation8 + $0x40] sm:$0xff]
          %v518 = vld [vmem:[#allocation8 + $0x48] sm:$0xff]
          %v519 = vld [vmem:[#allocation8 + $0x50] sm:$0xff]
          %v520 = vld [vmem:[#allocation8 + $0x58] sm:$0xff]
          %v521 = vld [vmem:[#allocation8 + $0x60] sm:$0xff]
          %v522 = vld [vmem:[#allocation8 + $0x68] sm:$0xff]
          %v523 = vld [vmem:[#allocation8 + $0x70] sm:$0xff]
          %v524 = vld [vmem:[#allocation8 + $0x78] sm:$0xff]
          %v525 = vld [vmem:[%s2] sm:$0x1]
          %v527 = vlaneseq
          %v528 = vshrl.u32 %v527, 7
          %v529 = vsub.s32 0, %v528
          %v530 = vrot.slane %v525, %v529
          %532 = vmatprep.subr.mxu0 0.0
          %533 = vmatpush1.msra.mxu0 %v509
          %534 = vmatprep.subr.mxu0 0.0
          %535 = vmatpush1.msra.mxu0 %v510
          %536 = vmatprep.subr.mxu0 0.0
          %537 = vmatpush1.msra.mxu0 %v511
          %538 = vmatprep.subr.mxu0 0.0
          %539 = vmatpush1.msra.mxu0 %v512
          %540 = vmatprep.subr.mxu0 0.0
          %541 = vmatpush1.msra.mxu0 %v513
          %542 = vmatprep.subr.mxu0 0.0
          %543 = vmatpush1.msra.mxu0 %v514
          %544 = vmatprep.subr.mxu0 0.0
          %545 = vmatpush1.msra.mxu0 %v515
          %546 = vmatprep.subr.mxu0 0.0
          %547 = vmatpush1.msra.mxu0 %v516
          %548 = vmatprep.subr.mxu0 0.0
          %549 = vmatpush1.msra.mxu0 %v517
          %550 = vmatprep.subr.mxu0 0.0
          %551 = vmatpush1.msra.mxu0 %v518
          %552 = vmatprep.subr.mxu0 0.0
          %553 = vmatpush1.msra.mxu0 %v519
          %554 = vmatprep.subr.mxu0 0.0
          %555 = vmatpush1.msra.mxu0 %v520
          %556 = vmatprep.subr.mxu0 0.0
          %557 = vmatpush1.msra.mxu0 %v521
          %558 = vmatprep.subr.mxu0 0.0
          %559 = vmatpush1.msra.mxu0 %v522
          %560 = vmatprep.subr.mxu0 0.0
          %561 = vmatpush1.msra.mxu0 %v523
          %562 = vmatprep.subr.mxu0 0.0
          %563 = vmatpush1.msra.mxu0 %v524
          %564 = vmatprep.subr.mxu0 0.0
          %565 = vmatpush1.msra.mxu0 0.0
          %566 = vmatprep.subr.mxu0 0.0
          %567 = vmatpush1.msra.mxu0 0.0
          %568 = vmatprep.subr.mxu0 0.0
          %569 = vmatpush1.msra.mxu0 0.0
          %570 = vmatprep.subr.mxu0 0.0
          %571 = vmatpush1.msra.mxu0 0.0
          %572 = vmatprep.subr.mxu0 0.0
          %573 = vmatpush1.msra.mxu0 0.0
          %574 = vmatprep.subr.mxu0 0.0
          %575 = vmatpush1.msra.mxu0 0.0
          %576 = vmatprep.subr.mxu0 0.0
          %577 = vmatpush1.msra.mxu0 0.0
          %578 = vmatprep.subr.mxu0 0.0
          %579 = vmatpush1.msra.mxu0 0.0
          %580 = vmatprep.subr.mxu0 0.0
          %581 = vmatpush1.msra.mxu0 0.0
          %582 = vmatprep.subr.mxu0 0.0
          %583 = vmatpush1.msra.mxu0 0.0
          %584 = vmatprep.subr.mxu0 0.0
          %585 = vmatpush1.msra.mxu0 0.0
          %586 = vmatprep.subr.mxu0 0.0
          %587 = vmatpush1.msra.mxu0 0.0
          %588 = vmatprep.subr.mxu0 0.0
          %589 = vmatpush1.msra.mxu0 0.0
          %590 = vmatprep.subr.mxu0 0.0
          %591 = vmatpush1.msra.mxu0 0.0
          %592 = vmatprep.subr.mxu0 0.0
          %593 = vmatpush1.msra.mxu0 0.0
          %594 = vmatprep.subr.mxu0 0.0
          %595 = vmatpush1.msra.mxu0 0.0
          %596 = vmatprep.mubr.f32.mxu0 0.0
          %597 = vmatmul.mubr.f32.gmra.mrb[0].mxu0 %v493
          %v598 = vpop.f32.mrb[0].mxu0
          %v599 = vadd.f32 %v530, %v598
          %v600 = vpop.f32.mrb[0].mxu0
          %601 = vmatprep.mubr.f32.mxu0 0.0
          %602 = vmatmul.mubr.f32.gmra.mrb[0].mxu0 %v494
          %v603 = vpop.f32.mrb[0].mxu0
          %v604 = vadd.f32 %v530, %v603
          %v605 = vpop.f32.mrb[0].mxu0
          %606 = vmatprep.mubr.f32.mxu0 0.0
          %607 = vmatmul.mubr.f32.gmra.mrb[0].mxu0 %v495
          %v608 = vpop.f32.mrb[0].mxu0
          %v609 = vadd.f32 %v530, %v608
          %v610 = vpop.f32.mrb[0].mxu0
          %611 = vmatprep.mubr.f32.mxu0 0.0
          %612 = vmatmul.mubr.f32.gmra.mrb[0].mxu0 %v496
          %v613 = vpop.f32.mrb[0].mxu0
          %v614 = vadd.f32 %v530, %v613
          %v615 = vpop.f32.mrb[0].mxu0
          %616 = vmatprep.mubr.f32.mxu0 0.0
          %617 = vmatmul.mubr.f32.gmra.mrb[0].mxu0 %v497
          %v618 = vpop.f32.mrb[0].mxu0
          %v619 = vadd.f32 %v530, %v618
          %v620 = vpop.f32.mrb[0].mxu0
          %621 = vmatprep.mubr.f32.mxu0 0.0
          %622 = vmatmul.mubr.f32.gmra.mrb[0].mxu0 %v498
          %v623 = vpop.f32.mrb[0].mxu0
          %v624 = vadd.f32 %v530, %v623
          %v625 = vpop.f32.mrb[0].mxu0
          %626 = vmatprep.mubr.f32.mxu0 0.0
          %627 = vmatmul.mubr.f32.gmra.mrb[0].mxu0 %v499
          %v628 = vpop.f32.mrb[0].mxu0
          %v629 = vadd.f32 %v530, %v628
          %v630 = vpop.f32.mrb[0].mxu0
          %631 = vmatprep.mubr.f32.mxu0 0.0
          %632 = vmatmul.mubr.f32.gmra.mrb[0].mxu0 %v500
          %v633 = vpop.f32.mrb[0].mxu0
          %v634 = vadd.f32 %v530, %v633
          %v635 = vpop.f32.mrb[0].mxu0
          %636 = vmatprep.mubr.f32.mxu0 0.0
          %637 = vmatmul.mubr.f32.gmra.mrb[0].mxu0 %v501
          %v638 = vpop.f32.mrb[0].mxu0
          %v639 = vadd.f32 %v530, %v638
          %v640 = vpop.f32.mrb[0].mxu0
          %641 = vmatprep.mubr.f32.mxu0 0.0
          %642 = vmatmul.mubr.f32.gmra.mrb[0].mxu0 %v502
          %v643 = vpop.f32.mrb[0].mxu0
          %v644 = vadd.f32 %v530, %v643
          %v645 = vpop.f32.mrb[0].mxu0
          %646 = vmatprep.mubr.f32.mxu0 0.0
          %647 = vmatmul.mubr.f32.gmra.mrb[0].mxu0 %v503
          %v648 = vpop.f32.mrb[0].mxu0
          %v649 = vadd.f32 %v530, %v648
          %v650 = vpop.f32.mrb[0].mxu0
          %651 = vmatprep.mubr.f32.mxu0 0.0
          %652 = vmatmul.mubr.f32.gmra.mrb[0].mxu0 %v504
          %v653 = vpop.f32.mrb[0].mxu0
          %v654 = vadd.f32 %v530, %v653
          %v655 = vpop.f32.mrb[0].mxu0
          %656 = vmatprep.mubr.f32.mxu0 0.0
          %657 = vmatmul.mubr.f32.gmra.mrb[0].mxu0 %v505
          %v658 = vpop.f32.mrb[0].mxu0
          %v659 = vadd.f32 %v530, %v658
          %v660 = vpop.f32.mrb[0].mxu0
          %661 = vmatprep.mubr.f32.mxu0 0.0
          %662 = vmatmul.mubr.f32.gmra.mrb[0].mxu0 %v506
          %v663 = vpop.f32.mrb[0].mxu0
          %v664 = vadd.f32 %v530, %v663
          %v665 = vpop.f32.mrb[0].mxu0
          %666 = vmatprep.mubr.f32.mxu0 0.0
          %667 = vmatmul.mubr.f32.gmra.mrb[0].mxu0 %v507
          %v668 = vpop.f32.mrb[0].mxu0
          %v669 = vadd.f32 %v530, %v668
          %v670 = vpop.f32.mrb[0].mxu0
          %671 = vmatprep.mubr.f32.mxu0 0.0
          %672 = vmatmul.mubr.f32.gmra.mrb[0].mxu0 %v508
          %v673 = vpop.f32.mrb[0].mxu0
          %v674 = vadd.f32 %v530, %v673
          %v675 = vpop.f32.mrb[0].mxu0
          %676 = vdwg.mxu0
          %v677 = vmax.f32 %v599, 0.0
          %v678 = vmax.f32 %v604, 0.0
          %v679 = vmax.f32 %v609, 0.0
          %v680 = vmax.f32 %v614, 0.0
          %v681 = vmax.f32 %v619, 0.0
          %v682 = vmax.f32 %v624, 0.0
          %v683 = vmax.f32 %v629, 0.0
          %v684 = vmax.f32 %v634, 0.0
          %v685 = vmax.f32 %v639, 0.0
          %v686 = vmax.f32 %v644, 0.0
          %v687 = vmax.f32 %v649, 0.0
          %v688 = vmax.f32 %v654, 0.0
          %v689 = vmax.f32 %v659, 0.0
          %v690 = vmax.f32 %v664, 0.0
          %v691 = vmax.f32 %v669, 0.0
          %v692 = vmax.f32 %v674, 0.0
          %s693 = scalar_lea.vmem [#allocation3], %s488
          %694 = vst [vmem:[%s693] sm:$0xff] %v677
          %695 = vst [vmem:[%s693 + $0x8] sm:$0xff] %v678
          %696 = vst [vmem:[%s693 + $0x10] sm:$0xff] %v679
          %697 = vst [vmem:[%s693 + $0x18] sm:$0xff] %v680
          %698 = vst [vmem:[%s693 + $0x20] sm:$0xff] %v681
          %699 = vst [vmem:[%s693 + $0x28] sm:$0xff] %v682
          %700 = vst [vmem:[%s693 + $0x30] sm:$0xff] %v683
          %701 = vst [vmem:[%s693 + $0x38] sm:$0xff] %v684
          %702 = vst [vmem:[%s693 + $0x40] sm:$0xff] %v685
          %703 = vst [vmem:[%s693 + $0x48] sm:$0xff] %v686
          %704 = vst [vmem:[%s693 + $0x50] sm:$0xff] %v687
          %705 = vst [vmem:[%s693 + $0x58] sm:$0xff] %v688
          %706 = vst [vmem:[%s693 + $0x60] sm:$0xff] %v689
          %707 = vst [vmem:[%s693 + $0x68] sm:$0xff] %v690
          %708 = vst [vmem:[%s693 + $0x70] sm:$0xff] %v691
          %709 = vst [vmem:[%s693 + $0x78] sm:$0xff] %v692
          %s710 = scalar_lea.vmem [#allocation2], %s488
          %711 = vst [vmem:[%s710] sm:$0xff] %v677
          %712 = vst [vmem:[%s710 + $0x8] sm:$0xff] %v678
          %713 = vst [vmem:[%s710 + $0x10] sm:$0xff] %v679
          %714 = vst [vmem:[%s710 + $0x18] sm:$0xff] %v680
          %715 = vst [vmem:[%s710 + $0x20] sm:$0xff] %v681
          %716 = vst [vmem:[%s710 + $0x28] sm:$0xff] %v682
          %717 = vst [vmem:[%s710 + $0x30] sm:$0xff] %v683
          %718 = vst [vmem:[%s710 + $0x38] sm:$0xff] %v684
          %719 = vst [vmem:[%s710 + $0x40] sm:$0xff] %v685
          %720 = vst [vmem:[%s710 + $0x48] sm:$0xff] %v686
          %721 = vst [vmem:[%s710 + $0x50] sm:$0xff] %v687
          %722 = vst [vmem:[%s710 + $0x58] sm:$0xff] %v688
          %723 = vst [vmem:[%s710 + $0x60] sm:$0xff] %v689
          %724 = vst [vmem:[%s710 + $0x68] sm:$0xff] %v690
          %725 = vst [vmem:[%s710 + $0x70] sm:$0xff] %v691
          %726 = vst [vmem:[%s710 + $0x78] sm:$0xff] %v692
          %v727 = vpack.c.bf16 %v678, %v677
          %v728 = vpack.c.bf16 %v680, %v679
          %v729 = vpack.c.bf16 %v682, %v681
          %v730 = vpack.c.bf16 %v684, %v683
          %v731 = vpack.c.bf16 %v686, %v685
          %v732 = vpack.c.bf16 %v688, %v687
          %v733 = vpack.c.bf16 %v690, %v689
          %v734 = vpack.c.bf16 %v692, %v691
          %s735 = sshra.s32 %s488, 4
          %s736 = sand.u32 %s488, 15
          %s737 = smul.addr %s735, 8
          %s738 = scalar_lea.vmem [#allocation4], %s737
          %739 = vst [vmem:[%s738] sm:$0xff] %v727
          %740 = vst [vmem:[%s738 + $0x8] sm:$0xff] %v728
          %741 = vst [vmem:[%s738 + $0x10] sm:$0xff] %v729
          %742 = vst [vmem:[%s738 + $0x18] sm:$0xff] %v730
          %743 = vst [vmem:[%s738 + $0x20] sm:$0xff] %v731
          %744 = vst [vmem:[%s738 + $0x28] sm:$0xff] %v732
          %745 = vst [vmem:[%s738 + $0x30] sm:$0xff] %v733
          %746 = vst [vmem:[%s738 + $0x38] sm:$0xff] %v734
        $region88: #{tpu_custom_call.1} parent=59 // pred_fallthru
          _
        %p747 = scmp.gt.s32.totalorder %s34, 0
        // Predicated region
        $region89: #{tpu_custom_call.1} parent=59 // pred_check
          %p748 = pneg %p747
        $region90: #{tpu_custom_call.1} parent=59 // pred_check_branch
          %750 = sbr.rel (%p748) target = $region92
        $region91: #{tpu_custom_call.1} parent=59 // pred_region
          %s751 = ssub.s32 %s34, 1
          %p752 = scmp.lt.s32.totalorder %s751, 0
          %s753 = ssub.s32 0, %s751
          %s754 = scalar_select %p752, %s753, %s751
          %s755 = sand.u32 %s754, 1
          %s756 = ssub.s32 0, %s755
          %s757 = scalar_select %p752, %s756, %s755
          %p758 = scmp.lt.s32.totalorder %s34, 0
          %s759 = ssub.s32 0, %s34
          %s760 = scalar_select %p758, %s759, %s34
          %s761 = sand.u32 %s760, 1
          %s762 = ssub.s32 0, %s761
          %s763 = scalar_select %p758, %s762, %s761
          %s764 = smul.u32 %s757, 384
          %s765 = smul.u32 %s763, 384
          %s766 = sadd.s32 %s765, %s488
          %s767 = scalar_lea.vmem [#allocation2], %s488
          %v768 = vld [vmem:[%s767] sm:$0xff]
          %v769 = vld [vmem:[%s767 + $0x8] sm:$0xff]
          %v770 = vld [vmem:[%s767 + $0x10] sm:$0xff]
          %v771 = vld [vmem:[%s767 + $0x18] sm:$0xff]
          %v772 = vld [vmem:[%s767 + $0x20] sm:$0xff]
          %v773 = vld [vmem:[%s767 + $0x28] sm:$0xff]
          %v774 = vld [vmem:[%s767 + $0x30] sm:$0xff]
          %v775 = vld [vmem:[%s767 + $0x38] sm:$0xff]
          %v776 = vld [vmem:[%s767 + $0x40] sm:$0xff]
          %v777 = vld [vmem:[%s767 + $0x48] sm:$0xff]
          %v778 = vld [vmem:[%s767 + $0x50] sm:$0xff]
          %v779 = vld [vmem:[%s767 + $0x58] sm:$0xff]
          %v780 = vld [vmem:[%s767 + $0x60] sm:$0xff]
          %v781 = vld [vmem:[%s767 + $0x68] sm:$0xff]
          %v782 = vld [vmem:[%s767 + $0x70] sm:$0xff]
          %v783 = vld [vmem:[%s767 + $0x78] sm:$0xff]
          %s784 = sshra.s32 %s764, 4
          %s785 = sand.u32 %s764, 15
          %s786 = smul.addr %s784, 8
          %s787 = scalar_lea.vmem [#allocation4], %s786
          %v788 = vld [vmem:[%s787] sm:$0xff]
          %v789 = vld [vmem:[%s787 + $0x8] sm:$0xff]
          %v790 = vld [vmem:[%s787 + $0x10] sm:$0xff]
          %v791 = vld [vmem:[%s787 + $0x18] sm:$0xff]
          %v792 = vld [vmem:[%s787 + $0x20] sm:$0xff]
          %v793 = vld [vmem:[%s787 + $0x28] sm:$0xff]
          %v794 = vld [vmem:[%s787 + $0x30] sm:$0xff]
          %v795 = vld [vmem:[%s787 + $0x38] sm:$0xff]
          %v796 = vld [vmem:[%s787 + $0x40] sm:$0xff]
          %v797 = vld [vmem:[%s787 + $0x48] sm:$0xff]
          %v798 = vld [vmem:[%s787 + $0x50] sm:$0xff]
          %v799 = vld [vmem:[%s787 + $0x58] sm:$0xff]
          %v800 = vld [vmem:[%s787 + $0x60] sm:$0xff]
          %v801 = vld [vmem:[%s787 + $0x68] sm:$0xff]
          %v802 = vld [vmem:[%s787 + $0x70] sm:$0xff]
          %v803 = vld [vmem:[%s787 + $0x78] sm:$0xff]
          %v804 = vld [vmem:[%s787 + $0x80] sm:$0xff]
          %v805 = vld [vmem:[%s787 + $0x88] sm:$0xff]
          %v806 = vld [vmem:[%s787 + $0x90] sm:$0xff]
          %v807 = vld [vmem:[%s787 + $0x98] sm:$0xff]
          %v808 = vld [vmem:[%s787 + $0xa0] sm:$0xff]
          %v809 = vld [vmem:[%s787 + $0xa8] sm:$0xff]
          %v810 = vld [vmem:[%s787 + $0xb0] sm:$0xff]
          %v811 = vld [vmem:[%s787 + $0xb8] sm:$0xff]
          %s812 = smul.u32 %s35, 96
          %s813 = smul.addr %s812, 4
          %s814 = scalar_lea.vmem %s3, %s813
          %v815 = vld [vmem:[%s814] sm:$0xff]
          %v816 = vld [vmem:[%s814 + $0x8] sm:$0xf]
          %v817 = vld [vmem:[%s814 + $0xc] sm:$0xff]
          %v818 = vld [vmem:[%s814 + $0x14] sm:$0xf]
          %v819 = vld [vmem:[%s814 + $0x18] sm:$0xff]
          %v820 = vld [vmem:[%s814 + $0x20] sm:$0xf]
          %v821 = vld [vmem:[%s814 + $0x24] sm:$0xff]
          %v822 = vld [vmem:[%s814 + $0x2c] sm:$0xf]
          %v823 = vld [vmem:[%s814 + $0x30] sm:$0xff]
          %v824 = vld [vmem:[%s814 + $0x38] sm:$0xf]
          %v825 = vld [vmem:[%s814 + $0x3c] sm:$0xff]
          %v826 = vld [vmem:[%s814 + $0x44] sm:$0xf]
          %v827 = vld [vmem:[%s814 + $0x48] sm:$0xff]
          %v828 = vld [vmem:[%s814 + $0x50] sm:$0xf]
          %v829 = vld [vmem:[%s814 + $0x54] sm:$0xff]
          %v830 = vld [vmem:[%s814 + $0x5c] sm:$0xf]
          %v831 = vld [vmem:[%s814 + $0x60] sm:$0xff]
          %v832 = vld [vmem:[%s814 + $0x68] sm:$0xf]
          %v833 = vld [vmem:[%s814 + $0x6c] sm:$0xff]
          %v834 = vld [vmem:[%s814 + $0x74] sm:$0xf]
          %v835 = vld [vmem:[%s814 + $0x78] sm:$0xff]
          %v836 = vld [vmem:[%s814 + $0x80] sm:$0xf]
          %v837 = vld [vmem:[%s814 + $0x84] sm:$0xff]
          %v838 = vld [vmem:[%s814 + $0x8c] sm:$0xf]
          %v839 = vld [vmem:[%s814 + $0x90] sm:$0xff]
          %v840 = vld [vmem:[%s814 + $0x98] sm:$0xf]
          %v841 = vld [vmem:[%s814 + $0x9c] sm:$0xff]
          %v842 = vld [vmem:[%s814 + $0xa4] sm:$0xf]
          %v843 = vld [vmem:[%s814 + $0xa8] sm:$0xff]
          %v844 = vld [vmem:[%s814 + $0xb0] sm:$0xf]
          %v845 = vld [vmem:[%s814 + $0xb4] sm:$0xff]
          %v846 = vld [vmem:[%s814 + $0xbc] sm:$0xf]
          %v847 = vld [vmem:[%s814 + $0xc0] sm:$0xff]
          %v848 = vld [vmem:[%s814 + $0xc8] sm:$0xf]
          %v849 = vld [vmem:[%s814 + $0xcc] sm:$0xff]
          %v850 = vld [vmem:[%s814 + $0xd4] sm:$0xf]
          %v851 = vld [vmem:[%s814 + $0xd8] sm:$0xff]
          %v852 = vld [vmem:[%s814 + $0xe0] sm:$0xf]
          %v853 = vld [vmem:[%s814 + $0xe4] sm:$0xff]
          %v854 = vld [vmem:[%s814 + $0xec] sm:$0xf]
          %v855 = vld [vmem:[%s814 + $0xf0] sm:$0xff]
          %v856 = vld [vmem:[%s814 + $0xf8] sm:$0xf]
          %v857 = vld [vmem:[%s814 + $0xfc] sm:$0xff]
          %v858 = vld [vmem:[%s814 + $0x104] sm:$0xf]
          %v859 = vld [vmem:[%s814 + $0x108] sm:$0xff]
          %v860 = vld [vmem:[%s814 + $0x110] sm:$0xf]
          %v861 = vld [vmem:[%s814 + $0x114] sm:$0xff]
          %v862 = vld [vmem:[%s814 + $0x11c] sm:$0xf]
          %v863 = vld [vmem:[%s814 + $0x120] sm:$0xff]
          %v864 = vld [vmem:[%s814 + $0x128] sm:$0xf]
          %v865 = vld [vmem:[%s814 + $0x12c] sm:$0xff]
          %v866 = vld [vmem:[%s814 + $0x134] sm:$0xf]
          %v867 = vld [vmem:[%s814 + $0x138] sm:$0xff]
          %v868 = vld [vmem:[%s814 + $0x140] sm:$0xf]
          %v869 = vld [vmem:[%s814 + $0x144] sm:$0xff]
          %v870 = vld [vmem:[%s814 + $0x14c] sm:$0xf]
          %v871 = vld [vmem:[%s814 + $0x150] sm:$0xff]
          %v872 = vld [vmem:[%s814 + $0x158] sm:$0xf]
          %v873 = vld [vmem:[%s814 + $0x15c] sm:$0xff]
          %v874 = vld [vmem:[%s814 + $0x164] sm:$0xf]
          %v875 = vld [vmem:[%s814 + $0x168] sm:$0xff]
          %v876 = vld [vmem:[%s814 + $0x170] sm:$0xf]
          %v877 = vld [vmem:[%s814 + $0x174] sm:$0xff]
          %v878 = vld [vmem:[%s814 + $0x17c] sm:$0xf]
          %v943 = vunpack.c.l.b16 %v815
          %v944 = vunpack.c.h.b16 %v815
          %v945 = vunpack.c.l.b16 %v816
          %v946 = vunpack.c.l.b16 %v817
          %v947 = vunpack.c.h.b16 %v817
          %v948 = vunpack.c.l.b16 %v818
          %v949 = vunpack.c.l.b16 %v819
          %v950 = vunpack.c.h.b16 %v819
          %v951 = vunpack.c.l.b16 %v820
          %v952 = vunpack.c.l.b16 %v821
          %v953 = vunpack.c.h.b16 %v821
          %v954 = vunpack.c.l.b16 %v822
          %v955 = vunpack.c.l.b16 %v823
          %v956 = vunpack.c.h.b16 %v823
          %v957 = vunpack.c.l.b16 %v824
          %v958 = vunpack.c.l.b16 %v825
          %v959 = vunpack.c.h.b16 %v825
          %v960 = vunpack.c.l.b16 %v826
          %v961 = vunpack.c.l.b16 %v827
          %v962 = vunpack.c.h.b16 %v827
          %v963 = vunpack.c.l.b16 %v828
          %v964 = vunpack.c.l.b16 %v829
          %v965 = vunpack.c.h.b16 %v829
          %v966 = vunpack.c.l.b16 %v830
          %v967 = vunpack.c.l.b16 %v831
          %v968 = vunpack.c.h.b16 %v831
          %v969 = vunpack.c.l.b16 %v832
          %v970 = vunpack.c.l.b16 %v833
          %v971 = vunpack.c.h.b16 %v833
          %v972 = vunpack.c.l.b16 %v834
          %v973 = vunpack.c.l.b16 %v835
          %v974 = vunpack.c.h.b16 %v835
          %v975 = vunpack.c.l.b16 %v836
          %v976 = vunpack.c.l.b16 %v837
          %v977 = vunpack.c.h.b16 %v837
          %v978 = vunpack.c.l.b16 %v838
          %v979 = vunpack.c.l.b16 %v839
          %v980 = vunpack.c.h.b16 %v839
          %v981 = vunpack.c.l.b16 %v840
          %v982 = vunpack.c.l.b16 %v841
          %v983 = vunpack.c.h.b16 %v841
          %v984 = vunpack.c.l.b16 %v842
          %v985 = vunpack.c.l.b16 %v843
          %v986 = vunpack.c.h.b16 %v843
          %v987 = vunpack.c.l.b16 %v844
          %v988 = vunpack.c.l.b16 %v845
          %v989 = vunpack.c.h.b16 %v845
          %v990 = vunpack.c.l.b16 %v846
          %v991 = vunpack.c.l.b16 %v847
          %v992 = vunpack.c.h.b16 %v847
          %v993 = vunpack.c.l.b16 %v848
          %v994 = vunpack.c.l.b16 %v849
          %v995 = vunpack.c.h.b16 %v849
          %v996 = vunpack.c.l.b16 %v850
          %v997 = vunpack.c.l.b16 %v851
          %v998 = vunpack.c.h.b16 %v851
          %v999 = vunpack.c.l.b16 %v852
          %v1000 = vunpack.c.l.b16 %v853
          %v1001 = vunpack.c.h.b16 %v853
          %v1002 = vunpack.c.l.b16 %v854
          %v1003 = vunpack.c.l.b16 %v855
          %v1004 = vunpack.c.h.b16 %v855
          %v1005 = vunpack.c.l.b16 %v856
          %v1006 = vunpack.c.l.b16 %v857
          %v1007 = vunpack.c.h.b16 %v857
          %v1008 = vunpack.c.l.b16 %v858
          %v1009 = vunpack.c.l.b16 %v859
          %v1010 = vunpack.c.h.b16 %v859
          %v1011 = vunpack.c.l.b16 %v860
          %v1012 = vunpack.c.l.b16 %v861
          %v1013 = vunpack.c.h.b16 %v861
          %v1014 = vunpack.c.l.b16 %v862
          %v1015 = vunpack.c.l.b16 %v863
          %v1016 = vunpack.c.h.b16 %v863
          %v1017 = vunpack.c.l.b16 %v864
          %v1018 = vunpack.c.l.b16 %v865
          %v1019 = vunpack.c.h.b16 %v865
          %v1020 = vunpack.c.l.b16 %v866
          %v1021 = vunpack.c.l.b16 %v867
          %v1022 = vunpack.c.h.b16 %v867
          %v1023 = vunpack.c.l.b16 %v868
          %v1024 = vunpack.c.l.b16 %v869
          %v1025 = vunpack.c.h.b16 %v869
          %v1026 = vunpack.c.l.b16 %v870
          %v1027 = vunpack.c.l.b16 %v871
          %v1028 = vunpack.c.h.b16 %v871
          %v1029 = vunpack.c.l.b16 %v872
          %v1030 = vunpack.c.l.b16 %v873
          %v1031 = vunpack.c.h.b16 %v873
          %v1032 = vunpack.c.l.b16 %v874
          %v1033 = vunpack.c.l.b16 %v875
          %v1034 = vunpack.c.h.b16 %v875
          %v1035 = vunpack.c.l.b16 %v876
          %v1036 = vunpack.c.l.b16 %v877
          %v1037 = vunpack.c.h.b16 %v877
          %v1038 = vunpack.c.l.b16 %v878
          %v1039 = vpack.c.b16 %v946, %v943
          %v1040 = vpack.c.b16 %v947, %v944
          %v1041 = vpack.c.b16 %v948, %v945
          %v1042 = vpack.c.b16 %v952, %v949
          %v1043 = vpack.c.b16 %v953, %v950
          %v1044 = vpack.c.b16 %v954, %v951
          %v1045 = vpack.c.b16 %v958, %v955
          %v1046 = vpack.c.b16 %v959, %v956
          %v1047 = vpack.c.b16 %v960, %v957
          %v1048 = vpack.c.b16 %v964, %v961
          %v1049 = vpack.c.b16 %v965, %v962
          %v1050 = vpack.c.b16 %v966, %v963
          %v1051 = vpack.c.b16 %v970, %v967
          %v1052 = vpack.c.b16 %v971, %v968
          %v1053 = vpack.c.b16 %v972, %v969
          %v1054 = vpack.c.b16 %v976, %v973
          %v1055 = vpack.c.b16 %v977, %v974
          %v1056 = vpack.c.b16 %v978, %v975
          %v1057 = vpack.c.b16 %v982, %v979
          %v1058 = vpack.c.b16 %v983, %v980
          %v1059 = vpack.c.b16 %v984, %v981
          %v1060 = vpack.c.b16 %v988, %v985
          %v1061 = vpack.c.b16 %v989, %v986
          %v1062 = vpack.c.b16 %v990, %v987
          %v1063 = vpack.c.b16 %v994, %v991
          %v1064 = vpack.c.b16 %v995, %v992
          %v1065 = vpack.c.b16 %v996, %v993
          %v1066 = vpack.c.b16 %v1000, %v997
          %v1067 = vpack.c.b16 %v1001, %v998
          %v1068 = vpack.c.b16 %v1002, %v999
          %v1069 = vpack.c.b16 %v1006, %v1003
          %v1070 = vpack.c.b16 %v1007, %v1004
          %v1071 = vpack.c.b16 %v1008, %v1005
          %v1072 = vpack.c.b16 %v1012, %v1009
          %v1073 = vpack.c.b16 %v1013, %v1010
          %v1074 = vpack.c.b16 %v1014, %v1011
          %v1075 = vpack.c.b16 %v1018, %v1015
          %v1076 = vpack.c.b16 %v1019, %v1016
          %v1077 = vpack.c.b16 %v1020, %v1017
          %v1078 = vpack.c.b16 %v1024, %v1021
          %v1079 = vpack.c.b16 %v1025, %v1022
          %v1080 = vpack.c.b16 %v1026, %v1023
          %v1081 = vpack.c.b16 %v1030, %v1027
          %v1082 = vpack.c.b16 %v1031, %v1028
          %v1083 = vpack.c.b16 %v1032, %v1029
          %v1084 = vpack.c.b16 %v1036, %v1033
          %v1085 = vpack.c.b16 %v1037, %v1034
          %v1086 = vpack.c.b16 %v1038, %v1035
          %1135 = vmatprep.subr.bf16.mxu0 0
          %1136 = vmatpush1.bf16.msra.mxu0 %v788
          %1137 = vmatprep.subr.bf16.mxu0 0
          %1138 = vmatpush1.bf16.msra.mxu0 %v789
          %1139 = vmatprep.subr.bf16.mxu0 0
          %1140 = vmatpush1.bf16.msra.mxu0 %v790
          %1141 = vmatprep.subr.bf16.mxu0 0
          %1142 = vmatpush1.bf16.msra.mxu0 %v791
          %1143 = vmatprep.subr.bf16.mxu0 0
          %1144 = vmatpush1.bf16.msra.mxu0 %v792
          %1145 = vmatprep.subr.bf16.mxu0 0
          %1146 = vmatpush1.bf16.msra.mxu0 %v793
          %1147 = vmatprep.subr.bf16.mxu0 0
          %1148 = vmatpush1.bf16.msra.mxu0 %v794
          %1149 = vmatprep.subr.bf16.mxu0 0
          %1150 = vmatpush1.bf16.msra.mxu0 %v795
          %1151 = vmatprep.subr.bf16.mxu0 0
          %1152 = vmatpush1.bf16.msra.mxu0 %v796
          %1153 = vmatprep.subr.bf16.mxu0 0
          %1154 = vmatpush1.bf16.msra.mxu0 %v797
          %1155 = vmatprep.subr.bf16.mxu0 0
          %1156 = vmatpush1.bf16.msra.mxu0 %v798
          %1157 = vmatprep.subr.bf16.mxu0 0
          %1158 = vmatpush1.bf16.msra.mxu0 %v799
          %1159 = vmatprep.subr.bf16.mxu0 0
          %1160 = vmatpush1.bf16.msra.mxu0 %v800
          %1161 = vmatprep.subr.bf16.mxu0 0
          %1162 = vmatpush1.bf16.msra.mxu0 %v801
          %1163 = vmatprep.subr.bf16.mxu0 0
          %1164 = vmatpush1.bf16.msra.mxu0 %v802
          %1165 = vmatprep.subr.bf16.mxu0 0
          %1166 = vmatpush1.bf16.msra.mxu0 %v803
          %1167 = vmatprep.mubr.bf16.mxu0 %v1040
          %1168 = vmatmul.mubr.bf16.gmra.mrb[0].mxu0 %v1039
          %v1169 = vpop.f32.mrb[0].mxu0
          %v1170 = vadd.f32 0.0, %v1169
          %v1171 = vpop.f32.mrb[0].mxu0
          %v1172 = vpop.f32.mrb[0].mxu0
          %v1173 = vadd.f32 0.0, %v1172
          %v1174 = vpop.f32.mrb[0].mxu0
          %1175 = vmatprep.mubr.bf16.mxu0 %v1043
          %1176 = vmatmul.mubr.bf16.gmra.mrb[0].mxu0 %v1042
          %v1177 = vpop.f32.mrb[0].mxu0
          %v1178 = vadd.f32 0.0, %v1177
          %v1179 = vpop.f32.mrb[0].mxu0
          %v1180 = vpop.f32.mrb[0].mxu0
          %v1181 = vadd.f32 0.0, %v1180
          %v1182 = vpop.f32.mrb[0].mxu0
          %1183 = vmatprep.mubr.bf16.mxu0 %v1046
          %1184 = vmatmul.mubr.bf16.gmra.mrb[0].mxu0 %v1045
          %v1185 = vpop.f32.mrb[0].mxu0
          %v1186 = vadd.f32 0.0, %v1185
          %v1187 = vpop.f32.mrb[0].mxu0
          %v1188 = vpop.f32.mrb[0].mxu0
          %v1189 = vadd.f32 0.0, %v1188
          %v1190 = vpop.f32.mrb[0].mxu0
          %1191 = vmatprep.mubr.bf16.mxu0 %v1049
          %1192 = vmatmul.mubr.bf16.gmra.mrb[0].mxu0 %v1048
          %v1193 = vpop.f32.mrb[0].mxu0
          %v1194 = vadd.f32 0.0, %v1193
          %v1195 = vpop.f32.mrb[0].mxu0
          %v1196 = vpop.f32.mrb[0].mxu0
          %v1197 = vadd.f32 0.0, %v1196
          %v1198 = vpop.f32.mrb[0].mxu0
          %1199 = vmatprep.mubr.bf16.mxu0 %v1052
          %1200 = vmatmul.mubr.bf16.gmra.mrb[0].mxu0 %v1051
          %v1201 = vpop.f32.mrb[0].mxu0
          %v1202 = vadd.f32 0.0, %v1201
          %v1203 = vpop.f32.mrb[0].mxu0
          %v1204 = vpop.f32.mrb[0].mxu0
          %v1205 = vadd.f32 0.0, %v1204
          %v1206 = vpop.f32.mrb[0].mxu0
          %1207 = vmatprep.mubr.bf16.mxu0 %v1055
          %1208 = vmatmul.mubr.bf16.gmra.mrb[0].mxu0 %v1054
          %v1209 = vpop.f32.mrb[0].mxu0
          %v1210 = vadd.f32 0.0, %v1209
          %v1211 = vpop.f32.mrb[0].mxu0
          %v1212 = vpop.f32.mrb[0].mxu0
          %v1213 = vadd.f32 0.0, %v1212
          %v1214 = vpop.f32.mrb[0].mxu0
          %1215 = vmatprep.mubr.bf16.mxu0 %v1058
          %1216 = vmatmul.mubr.bf16.gmra.mrb[0].mxu0 %v1057
          %v1217 = vpop.f32.mrb[0].mxu0
          %v1218 = vadd.f32 0.0, %v1217
          %v1219 = vpop.f32.mrb[0].mxu0
          %v1220 = vpop.f32.mrb[0].mxu0
          %v1221 = vadd.f32 0.0, %v1220
          %v1222 = vpop.f32.mrb[0].mxu0
          %1223 = vmatprep.mubr.bf16.mxu0 %v1061
          %1224 = vmatmul.mubr.bf16.gmra.mrb[0].mxu0 %v1060
          %v1225 = vpop.f32.mrb[0].mxu0
          %v1226 = vadd.f32 0.0, %v1225
          %v1227 = vpop.f32.mrb[0].mxu0
          %v1228 = vpop.f32.mrb[0].mxu0
          %v1229 = vadd.f32 0.0, %v1228
          %v1230 = vpop.f32.mrb[0].mxu0
          %1231 = vmatprep.mubr.bf16.mxu0 %v1064
          %1232 = vmatmul.mubr.bf16.gmra.mrb[0].mxu0 %v1063
          %v1233 = vpop.f32.mrb[0].mxu0
          %v1234 = vadd.f32 0.0, %v1233
          %v1235 = vpop.f32.mrb[0].mxu0
          %v1236 = vpop.f32.mrb[0].mxu0
          %v1237 = vadd.f32 0.0, %v1236
          %v1238 = vpop.f32.mrb[0].mxu0
          %1239 = vmatprep.mubr.bf16.mxu0 %v1067
          %1240 = vmatmul.mubr.bf16.gmra.mrb[0].mxu0 %v1066
          %v1241 = vpop.f32.mrb[0].mxu0
          %v1242 = vadd.f32 0.0, %v1241
          %v1243 = vpop.f32.mrb[0].mxu0
          %v1244 = vpop.f32.mrb[0].mxu0
          %v1245 = vadd.f32 0.0, %v1244
          %v1246 = vpop.f32.mrb[0].mxu0
          %1247 = vmatprep.mubr.bf16.mxu0 %v1070
          %1248 = vmatmul.mubr.bf16.gmra.mrb[0].mxu0 %v1069
          %v1249 = vpop.f32.mrb[0].mxu0
          %v1250 = vadd.f32 0.0, %v1249
          %v1251 = vpop.f32.mrb[0].mxu0
          %v1252 = vpop.f32.mrb[0].mxu0
          %v1253 = vadd.f32 0.0, %v1252
          %v1254 = vpop.f32.mrb[0].mxu0
          %1255 = vmatprep.mubr.bf16.mxu0 %v1073
          %1256 = vmatmul.mubr.bf16.gmra.mrb[0].mxu0 %v1072
          %v1257 = vpop.f32.mrb[0].mxu0
          %v1258 = vadd.f32 0.0, %v1257
          %v1259 = vpop.f32.mrb[0].mxu0
          %v1260 = vpop.f32.mrb[0].mxu0
          %v1261 = vadd.f32 0.0, %v1260
          %v1262 = vpop.f32.mrb[0].mxu0
          %1263 = vmatprep.mubr.bf16.mxu0 %v1076
          %1264 = vmatmul.mubr.bf16.gmra.mrb[0].mxu0 %v1075
          %v1265 = vpop.f32.mrb[0].mxu0
          %v1266 = vadd.f32 0.0, %v1265
          %v1267 = vpop.f32.mrb[0].mxu0
          %v1268 = vpop.f32.mrb[0].mxu0
          %v1269 = vadd.f32 0.0, %v1268
          %v1270 = vpop.f32.mrb[0].mxu0
          %1271 = vmatprep.mubr.bf16.mxu0 %v1079
          %1272 = vmatmul.mubr.bf16.gmra.mrb[0].mxu0 %v1078
          %v1273 = vpop.f32.mrb[0].mxu0
          %v1274 = vadd.f32 0.0, %v1273
          %v1275 = vpop.f32.mrb[0].mxu0
          %v1276 = vpop.f32.mrb[0].mxu0
          %v1277 = vadd.f32 0.0, %v1276
          %v1278 = vpop.f32.mrb[0].mxu0
          %1279 = vmatprep.mubr.bf16.mxu0 %v1082
          %1280 = vmatmul.mubr.bf16.gmra.mrb[0].mxu0 %v1081
          %v1281 = vpop.f32.mrb[0].mxu0
          %v1282 = vadd.f32 0.0, %v1281
          %v1283 = vpop.f32.mrb[0].mxu0
          %v1284 = vpop.f32.mrb[0].mxu0
          %v1285 = vadd.f32 0.0, %v1284
          %v1286 = vpop.f32.mrb[0].mxu0
          %1287 = vmatprep.mubr.bf16.mxu0 %v1085
          %1288 = vmatmul.mubr.bf16.gmra.mrb[0].mxu0 %v1084
          %v1289 = vpop.f32.mrb[0].mxu0
          %v1290 = vadd.f32 0.0, %v1289
          %v1291 = vpop.f32.mrb[0].mxu0
          %v1292 = vpop.f32.mrb[0].mxu0
          %v1293 = vadd.f32 0.0, %v1292
          %v1294 = vpop.f32.mrb[0].mxu0
          %1295 = vdwg.mxu0
          %1296 = vmatprep.subr.bf16.mxu0 0
          %1297 = vmatpush1.bf16.msra.mxu0 %v804
          %1298 = vmatprep.subr.bf16.mxu0 0
          %1299 = vmatpush1.bf16.msra.mxu0 %v805
          %1300 = vmatprep.subr.bf16.mxu0 0
          %1301 = vmatpush1.bf16.msra.mxu0 %v806
          %1302 = vmatprep.subr.bf16.mxu0 0
          %1303 = vmatpush1.bf16.msra.mxu0 %v807
          %1304 = vmatprep.subr.bf16.mxu0 0
          %1305 = vmatpush1.bf16.msra.mxu0 %v808
          %1306 = vmatprep.subr.bf16.mxu0 0
          %1307 = vmatpush1.bf16.msra.mxu0 %v809
          %1308 = vmatprep.subr.bf16.mxu0 0
          %1309 = vmatpush1.bf16.msra.mxu0 %v810
          %1310 = vmatprep.subr.bf16.mxu0 0
          %1311 = vmatpush1.bf16.msra.mxu0 %v811
          %1312 = vmatprep.subr.bf16.mxu0 0
          %1313 = vmatpush1.bf16.msra.mxu0 0
          %1314 = vmatprep.subr.bf16.mxu0 0
          %1315 = vmatpush1.bf16.msra.mxu0 0
          %1316 = vmatprep.subr.bf16.mxu0 0
          %1317 = vmatpush1.bf16.msra.mxu0 0
          %1318 = vmatprep.subr.bf16.mxu0 0
          %1319 = vmatpush1.bf16.msra.mxu0 0
          %1320 = vmatprep.subr.bf16.mxu0 0
          %1321 = vmatpush1.bf16.msra.mxu0 0
          %1322 = vmatprep.subr.bf16.mxu0 0
          %1323 = vmatpush1.bf16.msra.mxu0 0
          %1324 = vmatprep.subr.bf16.mxu0 0
          %1325 = vmatpush1.bf16.msra.mxu0 0
          %1326 = vmatprep.subr.bf16.mxu0 0
          %1327 = vmatpush1.bf16.msra.mxu0 0
          %1328 = vmatprep.mubr.bf16.mxu0 0
          %1329 = vmatmul.mubr.bf16.gmra.mrb[0].mxu0 %v1041
          %v1330 = vpop.f32.mrb[0].mxu0
          %v1331 = vadd.f32 %v1170, %v1330
          %v1332 = vpop.f32.mrb[0].mxu0
          %v1333 = vpop.f32.mrb[0].mxu0
          %v1334 = vadd.f32 %v1173, %v1333
          %v1335 = vpop.f32.mrb[0].mxu0
          %1336 = vmatprep.mubr.bf16.mxu0 0
          %1337 = vmatmul.mubr.bf16.gmra.mrb[0].mxu0 %v1044
          %v1338 = vpop.f32.mrb[0].mxu0
          %v1339 = vadd.f32 %v1178, %v1338
          %v1340 = vpop.f32.mrb[0].mxu0
          %v1341 = vpop.f32.mrb[0].mxu0
          %v1342 = vadd.f32 %v1181, %v1341
          %v1343 = vpop.f32.mrb[0].mxu0
          %1344 = vmatprep.mubr.bf16.mxu0 0
          %1345 = vmatmul.mubr.bf16.gmra.mrb[0].mxu0 %v1047
          %v1346 = vpop.f32.mrb[0].mxu0
          %v1347 = vadd.f32 %v1186, %v1346
          %v1348 = vpop.f32.mrb[0].mxu0
          %v1349 = vpop.f32.mrb[0].mxu0
          %v1350 = vadd.f32 %v1189, %v1349
          %v1351 = vpop.f32.mrb[0].mxu0
          %1352 = vmatprep.mubr.bf16.mxu0 0
          %1353 = vmatmul.mubr.bf16.gmra.mrb[0].mxu0 %v1050
          %v1354 = vpop.f32.mrb[0].mxu0
          %v1355 = vadd.f32 %v1194, %v1354
          %v1356 = vpop.f32.mrb[0].mxu0
          %v1357 = vpop.f32.mrb[0].mxu0
          %v1358 = vadd.f32 %v1197, %v1357
          %v1359 = vpop.f32.mrb[0].mxu0
          %1360 = vmatprep.mubr.bf16.mxu0 0
          %1361 = vmatmul.mubr.bf16.gmra.mrb[0].mxu0 %v1053
          %v1362 = vpop.f32.mrb[0].mxu0
          %v1363 = vadd.f32 %v1202, %v1362
          %v1364 = vpop.f32.mrb[0].mxu0
          %v1365 = vpop.f32.mrb[0].mxu0
          %v1366 = vadd.f32 %v1205, %v1365
          %v1367 = vpop.f32.mrb[0].mxu0
          %1368 = vmatprep.mubr.bf16.mxu0 0
          %1369 = vmatmul.mubr.bf16.gmra.mrb[0].mxu0 %v1056
          %v1370 = vpop.f32.mrb[0].mxu0
          %v1371 = vadd.f32 %v1210, %v1370
          %v1372 = vpop.f32.mrb[0].mxu0
          %v1373 = vpop.f32.mrb[0].mxu0
          %v1374 = vadd.f32 %v1213, %v1373
          %v1375 = vpop.f32.mrb[0].mxu0
          %1376 = vmatprep.mubr.bf16.mxu0 0
          %1377 = vmatmul.mubr.bf16.gmra.mrb[0].mxu0 %v1059
          %v1378 = vpop.f32.mrb[0].mxu0
          %v1379 = vadd.f32 %v1218, %v1378
          %v1380 = vpop.f32.mrb[0].mxu0
          %v1381 = vpop.f32.mrb[0].mxu0
          %v1382 = vadd.f32 %v1221, %v1381
          %v1383 = vpop.f32.mrb[0].mxu0
          %1384 = vmatprep.mubr.bf16.mxu0 0
          %1385 = vmatmul.mubr.bf16.gmra.mrb[0].mxu0 %v1062
          %v1386 = vpop.f32.mrb[0].mxu0
          %v1387 = vadd.f32 %v1226, %v1386
          %v1388 = vpop.f32.mrb[0].mxu0
          %v1389 = vpop.f32.mrb[0].mxu0
          %v1390 = vadd.f32 %v1229, %v1389
          %v1391 = vpop.f32.mrb[0].mxu0
          %1392 = vmatprep.mubr.bf16.mxu0 0
          %1393 = vmatmul.mubr.bf16.gmra.mrb[0].mxu0 %v1065
          %v1394 = vpop.f32.mrb[0].mxu0
          %v1395 = vadd.f32 %v1234, %v1394
          %v1396 = vpop.f32.mrb[0].mxu0
          %v1397 = vpop.f32.mrb[0].mxu0
          %v1398 = vadd.f32 %v1237, %v1397
          %v1399 = vpop.f32.mrb[0].mxu0
          %1400 = vmatprep.mubr.bf16.mxu0 0
          %1401 = vmatmul.mubr.bf16.gmra.mrb[0].mxu0 %v1068
          %v1402 = vpop.f32.mrb[0].mxu0
          %v1403 = vadd.f32 %v1242, %v1402
          %v1404 = vpop.f32.mrb[0].mxu0
          %v1405 = vpop.f32.mrb[0].mxu0
          %v1406 = vadd.f32 %v1245, %v1405
          %v1407 = vpop.f32.mrb[0].mxu0
          %1408 = vmatprep.mubr.bf16.mxu0 0
          %1409 = vmatmul.mubr.bf16.gmra.mrb[0].mxu0 %v1071
          %v1410 = vpop.f32.mrb[0].mxu0
          %v1411 = vadd.f32 %v1250, %v1410
          %v1412 = vpop.f32.mrb[0].mxu0
          %v1413 = vpop.f32.mrb[0].mxu0
          %v1414 = vadd.f32 %v1253, %v1413
          %v1415 = vpop.f32.mrb[0].mxu0
          %1416 = vmatprep.mubr.bf16.mxu0 0
          %1417 = vmatmul.mubr.bf16.gmra.mrb[0].mxu0 %v1074
          %v1418 = vpop.f32.mrb[0].mxu0
          %v1419 = vadd.f32 %v1258, %v1418
          %v1420 = vpop.f32.mrb[0].mxu0
          %v1421 = vpop.f32.mrb[0].mxu0
          %v1422 = vadd.f32 %v1261, %v1421
          %v1423 = vpop.f32.mrb[0].mxu0
          %1424 = vmatprep.mubr.bf16.mxu0 0
          %1425 = vmatmul.mubr.bf16.gmra.mrb[0].mxu0 %v1077
          %v1426 = vpop.f32.mrb[0].mxu0
          %v1427 = vadd.f32 %v1266, %v1426
          %v1428 = vpop.f32.mrb[0].mxu0
          %v1429 = vpop.f32.mrb[0].mxu0
          %v1430 = vadd.f32 %v1269, %v1429
          %v1431 = vpop.f32.mrb[0].mxu0
          %1432 = vmatprep.mubr.bf16.mxu0 0
          %1433 = vmatmul.mubr.bf16.gmra.mrb[0].mxu0 %v1080
          %v1434 = vpop.f32.mrb[0].mxu0
          %v1435 = vadd.f32 %v1274, %v1434
          %v1436 = vpop.f32.mrb[0].mxu0
          %v1437 = vpop.f32.mrb[0].mxu0
          %v1438 = vadd.f32 %v1277, %v1437
          %v1439 = vpop.f32.mrb[0].mxu0
          %1440 = vmatprep.mubr.bf16.mxu0 0
          %1441 = vmatmul.mubr.bf16.gmra.mrb[0].mxu0 %v1083
          %v1442 = vpop.f32.mrb[0].mxu0
          %v1443 = vadd.f32 %v1282, %v1442
          %v1444 = vpop.f32.mrb[0].mxu0
          %v1445 = vpop.f32.mrb[0].mxu0
          %v1446 = vadd.f32 %v1285, %v1445
          %v1447 = vpop.f32.mrb[0].mxu0
          %1448 = vmatprep.mubr.bf16.mxu0 0
          %1449 = vmatmul.mubr.bf16.gmra.mrb[0].mxu0 %v1086
          %v1450 = vpop.f32.mrb[0].mxu0
          %v1451 = vadd.f32 %v1290, %v1450
          %v1452 = vpop.f32.mrb[0].mxu0
          %v1453 = vpop.f32.mrb[0].mxu0
          %v1454 = vadd.f32 %v1293, %v1453
          %v1455 = vpop.f32.mrb[0].mxu0
          %1456 = vdwg.mxu0
          %s1457 = scalar_lea.vmem %s4, %s488
          %v1458 = vld [vmem:[%s1457] sm:$0xff]
          %v1459 = vld [vmem:[%s1457 + $0x8] sm:$0xff]
          %v1460 = vld [vmem:[%s1457 + $0x10] sm:$0xff]
          %v1461 = vld [vmem:[%s1457 + $0x18] sm:$0xff]
          %v1462 = vld [vmem:[%s1457 + $0x20] sm:$0xff]
          %v1463 = vld [vmem:[%s1457 + $0x28] sm:$0xff]
          %v1464 = vld [vmem:[%s1457 + $0x30] sm:$0xff]
          %v1465 = vld [vmem:[%s1457 + $0x38] sm:$0xff]
          %v1466 = vld [vmem:[%s1457 + $0x40] sm:$0xff]
          %v1467 = vld [vmem:[%s1457 + $0x48] sm:$0xff]
          %v1468 = vld [vmem:[%s1457 + $0x50] sm:$0xff]
          %v1469 = vld [vmem:[%s1457 + $0x58] sm:$0xff]
          %v1470 = vld [vmem:[%s1457 + $0x60] sm:$0xff]
          %v1471 = vld [vmem:[%s1457 + $0x68] sm:$0xff]
          %v1472 = vld [vmem:[%s1457 + $0x70] sm:$0xff]
          %v1473 = vld [vmem:[%s1457 + $0x78] sm:$0xff]
          %s1474 = sadd.s32 %s488, 384
          %s1475 = scalar_lea.vmem %s4, %s1474
          %v1476 = vld [vmem:[%s1475] sm:$0xff]
          %v1477 = vld [vmem:[%s1475 + $0x8] sm:$0xff]
          %v1478 = vld [vmem:[%s1475 + $0x10] sm:$0xff]
          %v1479 = vld [vmem:[%s1475 + $0x18] sm:$0xff]
          %v1480 = vld [vmem:[%s1475 + $0x20] sm:$0xff]
          %v1481 = vld [vmem:[%s1475 + $0x28] sm:$0xff]
          %v1482 = vld [vmem:[%s1475 + $0x30] sm:$0xff]
          %v1483 = vld [vmem:[%s1475 + $0x38] sm:$0xff]
          %v1484 = vld [vmem:[%s1475 + $0x40] sm:$0xff]
          %v1485 = vld [vmem:[%s1475 + $0x48] sm:$0xff]
          %v1486 = vld [vmem:[%s1475 + $0x50] sm:$0xff]
          %v1487 = vld [vmem:[%s1475 + $0x58] sm:$0xff]
          %v1488 = vld [vmem:[%s1475 + $0x60] sm:$0xff]
          %v1489 = vld [vmem:[%s1475 + $0x68] sm:$0xff]
          %v1490 = vld [vmem:[%s1475 + $0x70] sm:$0xff]
          %v1491 = vld [vmem:[%s1475 + $0x78] sm:$0xff]
          %s1492 = sadd.s32 %s488, 768
          %s1493 = scalar_lea.vmem %s4, %s1492
          %v1494 = vld [vmem:[%s1493] sm:$0xff]
          %v1495 = vld [vmem:[%s1493 + $0x8] sm:$0xff]
          %v1496 = vld [vmem:[%s1493 + $0x10] sm:$0xff]
          %v1497 = vld [vmem:[%s1493 + $0x18] sm:$0xff]
          %v1498 = vld [vmem:[%s1493 + $0x20] sm:$0xff]
          %v1499 = vld [vmem:[%s1493 + $0x28] sm:$0xff]
          %v1500 = vld [vmem:[%s1493 + $0x30] sm:$0xff]
          %v1501 = vld [vmem:[%s1493 + $0x38] sm:$0xff]
          %v1502 = vld [vmem:[%s1493 + $0x40] sm:$0xff]
          %v1503 = vld [vmem:[%s1493 + $0x48] sm:$0xff]
          %v1504 = vld [vmem:[%s1493 + $0x50] sm:$0xff]
          %v1505 = vld [vmem:[%s1493 + $0x58] sm:$0xff]
          %v1506 = vld [vmem:[%s1493 + $0x60] sm:$0xff]
          %v1507 = vld [vmem:[%s1493 + $0x68] sm:$0xff]
          %v1508 = vld [vmem:[%s1493 + $0x70] sm:$0xff]
          %v1509 = vld [vmem:[%s1493 + $0x78] sm:$0xff]
          %v1510 = vld [vmem:[#allocation13] sm:$0xff]
          %v1511 = vld [vmem:[#allocation13 + $0x8] sm:$0xff]
          %v1512 = vld [vmem:[#allocation13 + $0x10] sm:$0xff]
          %v1513 = vld [vmem:[#allocation13 + $0x18] sm:$0xff]
          %v1514 = vld [vmem:[#allocation13 + $0x20] sm:$0xff]
          %v1515 = vld [vmem:[#allocation13 + $0x28] sm:$0xff]
          %v1516 = vld [vmem:[#allocation13 + $0x30] sm:$0xff]
          %v1517 = vld [vmem:[#allocation13 + $0x38] sm:$0xff]
          %v1518 = vld [vmem:[#allocation13 + $0x40] sm:$0xff]
          %v1519 = vld [vmem:[#allocation13 + $0x48] sm:$0xff]
          %v1520 = vld [vmem:[#allocation13 + $0x50] sm:$0xff]
          %v1521 = vld [vmem:[#allocation13 + $0x58] sm:$0xff]
          %v1522 = vld [vmem:[#allocation13 + $0x60] sm:$0xff]
          %v1523 = vld [vmem:[#allocation13 + $0x68] sm:$0xff]
          %v1524 = vld [vmem:[#allocation13 + $0x70] sm:$0xff]
          %v1525 = vld [vmem:[#allocation13 + $0x78] sm:$0xff]
          %v1526 = vld [vmem:[#allocation13 + $0x80] sm:$0xff]
          %v1527 = vld [vmem:[#allocation13 + $0x88] sm:$0xff]
          %v1528 = vld [vmem:[#allocation13 + $0x90] sm:$0xff]
          %v1529 = vld [vmem:[#allocation13 + $0x98] sm:$0xff]
          %v1530 = vld [vmem:[#allocation13 + $0xa0] sm:$0xff]
          %v1531 = vld [vmem:[#allocation13 + $0xa8] sm:$0xff]
          %v1532 = vld [vmem:[#allocation13 + $0xb0] sm:$0xff]
          %v1533 = vld [vmem:[#allocation13 + $0xb8] sm:$0xff]
          %v1534 = vld [vmem:[#allocation13 + $0xc0] sm:$0xff]
          %v1535 = vld [vmem:[#allocation13 + $0xc8] sm:$0xff]
          %v1536 = vld [vmem:[#allocation13 + $0xd0] sm:$0xff]
          %v1537 = vld [vmem:[#allocation13 + $0xd8] sm:$0xff]
          %v1538 = vld [vmem:[#allocation13 + $0xe0] sm:$0xff]
          %v1539 = vld [vmem:[#allocation13 + $0xe8] sm:$0xff]
          %v1540 = vld [vmem:[#allocation13 + $0xf0] sm:$0xff]
          %v1541 = vld [vmem:[#allocation13 + $0xf8] sm:$0xff]
          %1542 = vmatprep.subr.mxu0 %v1511
          %1543 = vmatpush1.msra.mxu0 %v1510
          %1544 = vmatprep.subr.mxu0 %v1513
          %1545 = vmatpush1.msra.mxu0 %v1512
          %1546 = vmatprep.subr.mxu0 %v1515
          %1547 = vmatpush1.msra.mxu0 %v1514
          %1548 = vmatprep.subr.mxu0 %v1517
          %1549 = vmatpush1.msra.mxu0 %v1516
          %1550 = vmatprep.subr.mxu0 %v1519
          %1551 = vmatpush1.msra.mxu0 %v1518
          %1552 = vmatprep.subr.mxu0 %v1521
          %1553 = vmatpush1.msra.mxu0 %v1520
          %1554 = vmatprep.subr.mxu0 %v1523
          %1555 = vmatpush1.msra.mxu0 %v1522
          %1556 = vmatprep.subr.mxu0 %v1525
          %1557 = vmatpush1.msra.mxu0 %v1524
          %1558 = vmatprep.subr.mxu0 %v1527
          %1559 = vmatpush1.msra.mxu0 %v1526
          %1560 = vmatprep.subr.mxu0 %v1529
          %1561 = vmatpush1.msra.mxu0 %v1528
          %1562 = vmatprep.subr.mxu0 %v1531
          %1563 = vmatpush1.msra.mxu0 %v1530
          %1564 = vmatprep.subr.mxu0 %v1533
          %1565 = vmatpush1.msra.mxu0 %v1532
          %1566 = vmatprep.subr.mxu0 %v1535
          %1567 = vmatpush1.msra.mxu0 %v1534
          %1568 = vmatprep.subr.mxu0 %v1537
          %1569 = vmatpush1.msra.mxu0 %v1536
          %1570 = vmatprep.subr.mxu0 %v1539
          %1571 = vmatpush1.msra.mxu0 %v1538
          %1572 = vmatprep.subr.mxu0 %v1541
          %1573 = vmatpush1.msra.mxu0 %v1540
          %1574 = vmatprep.subr.mxu0 0.0
          %1575 = vmatpush1.msra.mxu0 0.0
          %1576 = vmatprep.subr.mxu0 0.0
          %1577 = vmatpush1.msra.mxu0 0.0
          %1578 = vmatprep.subr.mxu0 0.0
          %1579 = vmatpush1.msra.mxu0 0.0
          %1580 = vmatprep.subr.mxu0 0.0
          %1581 = vmatpush1.msra.mxu0 0.0
          %1582 = vmatprep.subr.mxu0 0.0
          %1583 = vmatpush1.msra.mxu0 0.0
          %1584 = vmatprep.subr.mxu0 0.0
          %1585 = vmatpush1.msra.mxu0 0.0
          %1586 = vmatprep.subr.mxu0 0.0
          %1587 = vmatpush1.msra.mxu0 0.0
          %1588 = vmatprep.subr.mxu0 0.0
          %1589 = vmatpush1.msra.mxu0 0.0
          %1590 = vmatprep.subr.mxu0 0.0
          %1591 = vmatpush1.msra.mxu0 0.0
          %1592 = vmatprep.subr.mxu0 0.0
          %1593 = vmatpush1.msra.mxu0 0.0
          %1594 = vmatprep.subr.mxu0 0.0
          %1595 = vmatpush1.msra.mxu0 0.0
          %1596 = vmatprep.subr.mxu0 0.0
          %1597 = vmatpush1.msra.mxu0 0.0
          %1598 = vmatprep.subr.mxu0 0.0
          %1599 = vmatpush1.msra.mxu0 0.0
          %1600 = vmatprep.subr.mxu0 0.0
          %1601 = vmatpush1.msra.mxu0 0.0
          %1602 = vmatprep.subr.mxu0 0.0
          %1603 = vmatpush1.msra.mxu0 0.0
          %1604 = vmatprep.subr.mxu0 0.0
          %1605 = vmatpush1.msra.mxu0 0.0
          %1606 = vmatprep.mubr.f32.mxu0 0.0
          %1607 = vmatmul.mubr.f32.gmra.mrb[0].mxu0 %v768
          %v1608 = vpop.f32.mrb[0].mxu0
          %v1609 = vadd.f32 0.0, %v1608
          %v1610 = vpop.f32.mrb[0].mxu0
          %v1611 = vadd.f32 0.0, %v1610
          %1612 = vmatprep.mubr.f32.mxu0 0.0
          %1613 = vmatmul.mubr.f32.gmra.mrb[0].mxu0 %v769
          %v1614 = vpop.f32.mrb[0].mxu0
          %v1615 = vadd.f32 0.0, %v1614
          %v1616 = vpop.f32.mrb[0].mxu0
          %v1617 = vadd.f32 0.0, %v1616
          %1618 = vmatprep.mubr.f32.mxu0 0.0
          %1619 = vmatmul.mubr.f32.gmra.mrb[0].mxu0 %v770
          %v1620 = vpop.f32.mrb[0].mxu0
          %v1621 = vadd.f32 0.0, %v1620
          %v1622 = vpop.f32.mrb[0].mxu0
          %v1623 = vadd.f32 0.0, %v1622
          %1624 = vmatprep.mubr.f32.mxu0 0.0
          %1625 = vmatmul.mubr.f32.gmra.mrb[0].mxu0 %v771
          %v1626 = vpop.f32.mrb[0].mxu0
          %v1627 = vadd.f32 0.0, %v1626
          %v1628 = vpop.f32.mrb[0].mxu0
          %v1629 = vadd.f32 0.0, %v1628
          %1630 = vmatprep.mubr.f32.mxu0 0.0
          %1631 = vmatmul.mubr.f32.gmra.mrb[0].mxu0 %v772
          %v1632 = vpop.f32.mrb[0].mxu0
          %v1633 = vadd.f32 0.0, %v1632
          %v1634 = vpop.f32.mrb[0].mxu0
          %v1635 = vadd.f32 0.0, %v1634
          %1636 = vmatprep.mubr.f32.mxu0 0.0
          %1637 = vmatmul.mubr.f32.gmra.mrb[0].mxu0 %v773
          %v1638 = vpop.f32.mrb[0].mxu0
          %v1639 = vadd.f32 0.0, %v1638
          %v1640 = vpop.f32.mrb[0].mxu0
          %v1641 = vadd.f32 0.0, %v1640
          %1642 = vmatprep.mubr.f32.mxu0 0.0
          %1643 = vmatmul.mubr.f32.gmra.mrb[0].mxu0 %v774
          %v1644 = vpop.f32.mrb[0].mxu0
          %v1645 = vadd.f32 0.0, %v1644
          %v1646 = vpop.f32.mrb[0].mxu0
          %v1647 = vadd.f32 0.0, %v1646
          %1648 = vmatprep.mubr.f32.mxu0 0.0
          %1649 = vmatmul.mubr.f32.gmra.mrb[0].mxu0 %v775
          %v1650 = vpop.f32.mrb[0].mxu0
          %v1651 = vadd.f32 0.0, %v1650
          %v1652 = vpop.f32.mrb[0].mxu0
          %v1653 = vadd.f32 0.0, %v1652
          %1654 = vmatprep.mubr.f32.mxu0 0.0
          %1655 = vmatmul.mubr.f32.gmra.mrb[0].mxu0 %v776
          %v1656 = vpop.f32.mrb[0].mxu0
          %v1657 = vadd.f32 0.0, %v1656
          %v1658 = vpop.f32.mrb[0].mxu0
          %v1659 = vadd.f32 0.0, %v1658
          %1660 = vmatprep.mubr.f32.mxu0 0.0
          %1661 = vmatmul.mubr.f32.gmra.mrb[0].mxu0 %v777
          %v1662 = vpop.f32.mrb[0].mxu0
          %v1663 = vadd.f32 0.0, %v1662
          %v1664 = vpop.f32.mrb[0].mxu0
          %v1665 = vadd.f32 0.0, %v1664
          %1666 = vmatprep.mubr.f32.mxu0 0.0
          %1667 = vmatmul.mubr.f32.gmra.mrb[0].mxu0 %v778
          %v1668 = vpop.f32.mrb[0].mxu0
          %v1669 = vadd.f32 0.0, %v1668
          %v1670 = vpop.f32.mrb[0].mxu0
          %v1671 = vadd.f32 0.0, %v1670
          %1672 = vmatprep.mubr.f32.mxu0 0.0
          %1673 = vmatmul.mubr.f32.gmra.mrb[0].mxu0 %v779
          %v1674 = vpop.f32.mrb[0].mxu0
          %v1675 = vadd.f32 0.0, %v1674
          %v1676 = vpop.f32.mrb[0].mxu0
          %v1677 = vadd.f32 0.0, %v1676
          %1678 = vmatprep.mubr.f32.mxu0 0.0
          %1679 = vmatmul.mubr.f32.gmra.mrb[0].mxu0 %v780
          %v1680 = vpop.f32.mrb[0].mxu0
          %v1681 = vadd.f32 0.0, %v1680
          %v1682 = vpop.f32.mrb[0].mxu0
          %v1683 = vadd.f32 0.0, %v1682
          %1684 = vmatprep.mubr.f32.mxu0 0.0
          %1685 = vmatmul.mubr.f32.gmra.mrb[0].mxu0 %v781
          %v1686 = vpop.f32.mrb[0].mxu0
          %v1687 = vadd.f32 0.0, %v1686
          %v1688 = vpop.f32.mrb[0].mxu0
          %v1689 = vadd.f32 0.0, %v1688
          %1690 = vmatprep.mubr.f32.mxu0 0.0
          %1691 = vmatmul.mubr.f32.gmra.mrb[0].mxu0 %v782
          %v1692 = vpop.f32.mrb[0].mxu0
          %v1693 = vadd.f32 0.0, %v1692
          %v1694 = vpop.f32.mrb[0].mxu0
          %v1695 = vadd.f32 0.0, %v1694
          %1696 = vmatprep.mubr.f32.mxu0 0.0
          %1697 = vmatmul.mubr.f32.gmra.mrb[0].mxu0 %v783
          %v1698 = vpop.f32.mrb[0].mxu0
          %v1699 = vadd.f32 0.0, %v1698
          %v1700 = vpop.f32.mrb[0].mxu0
          %v1701 = vadd.f32 0.0, %v1700
          %1702 = vdwg.mxu0
          %v1703 = vld [vmem:[#allocation10] sm:$0xff]
          %v1704 = vld [vmem:[#allocation10 + $0x8] sm:$0xff]
          %v1705 = vld [vmem:[#allocation10 + $0x10] sm:$0xff]
          %v1706 = vld [vmem:[#allocation10 + $0x18] sm:$0xff]
          %v1707 = vld [vmem:[#allocation10 + $0x20] sm:$0xff]
          %v1708 = vld [vmem:[#allocation10 + $0x28] sm:$0xff]
          %v1709 = vld [vmem:[#allocation10 + $0x30] sm:$0xff]
          %v1710 = vld [vmem:[#allocation10 + $0x38] sm:$0xff]
          %v1711 = vld [vmem:[#allocation10 + $0x40] sm:$0xff]
          %v1712 = vld [vmem:[#allocation10 + $0x48] sm:$0xff]
          %v1713 = vld [vmem:[#allocation10 + $0x50] sm:$0xff]
          %v1714 = vld [vmem:[#allocation10 + $0x58] sm:$0xff]
          %v1715 = vld [vmem:[#allocation10 + $0x60] sm:$0xff]
          %v1716 = vld [vmem:[#allocation10 + $0x68] sm:$0xff]
          %v1717 = vld [vmem:[#allocation10 + $0x70] sm:$0xff]
          %v1718 = vld [vmem:[#allocation10 + $0x78] sm:$0xff]
          %v1719 = vld [vmem:[#allocation11] sm:$0xff]
          %v1720 = vld [vmem:[#allocation11 + $0x8] sm:$0xff]
          %v1721 = vld [vmem:[#allocation11 + $0x10] sm:$0xff]
          %v1722 = vld [vmem:[#allocation11 + $0x18] sm:$0xff]
          %v1723 = vld [vmem:[#allocation11 + $0x20] sm:$0xff]
          %v1724 = vld [vmem:[#allocation11 + $0x28] sm:$0xff]
          %v1725 = vld [vmem:[#allocation11 + $0x30] sm:$0xff]
          %v1726 = vld [vmem:[#allocation11 + $0x38] sm:$0xff]
          %v1727 = vld [vmem:[#allocation11 + $0x40] sm:$0xff]
          %v1728 = vld [vmem:[#allocation11 + $0x48] sm:$0xff]
          %v1729 = vld [vmem:[#allocation11 + $0x50] sm:$0xff]
          %v1730 = vld [vmem:[#allocation11 + $0x58] sm:$0xff]
          %v1731 = vld [vmem:[#allocation11 + $0x60] sm:$0xff]
          %v1732 = vld [vmem:[#allocation11 + $0x68] sm:$0xff]
          %v1733 = vld [vmem:[#allocation11 + $0x70] sm:$0xff]
          %v1734 = vld [vmem:[#allocation11 + $0x78] sm:$0xff]
          %1735 = vmatprep.subr.mxu0 0.0
          %1736 = vmatpush1.msra.mxu0 %v1719
          %1737 = vmatprep.subr.mxu0 0.0
          %1738 = vmatpush1.msra.mxu0 %v1720
          %1739 = vmatprep.subr.mxu0 0.0
          %1740 = vmatpush1.msra.mxu0 %v1721
          %1741 = vmatprep.subr.mxu0 0.0
          %1742 = vmatpush1.msra.mxu0 %v1722
          %1743 = vmatprep.subr.mxu0 0.0
          %1744 = vmatpush1.msra.mxu0 %v1723
          %1745 = vmatprep.subr.mxu0 0.0
          %1746 = vmatpush1.msra.mxu0 %v1724
          %1747 = vmatprep.subr.mxu0 0.0
          %1748 = vmatpush1.msra.mxu0 %v1725
          %1749 = vmatprep.subr.mxu0 0.0
          %1750 = vmatpush1.msra.mxu0 %v1726
          %1751 = vmatprep.subr.mxu0 0.0
          %1752 = vmatpush1.msra.mxu0 %v1727
          %1753 = vmatprep.subr.mxu0 0.0
          %1754 = vmatpush1.msra.mxu0 %v1728
          %1755 = vmatprep.subr.mxu0 0.0
          %1756 = vmatpush1.msra.mxu0 %v1729
          %1757 = vmatprep.subr.mxu0 0.0
          %1758 = vmatpush1.msra.mxu0 %v1730
          %1759 = vmatprep.subr.mxu0 0.0
          %1760 = vmatpush1.msra.mxu0 %v1731
          %1761 = vmatprep.subr.mxu0 0.0
          %1762 = vmatpush1.msra.mxu0 %v1732
          %1763 = vmatprep.subr.mxu0 0.0
          %1764 = vmatpush1.msra.mxu0 %v1733
          %1765 = vmatprep.subr.mxu0 0.0
          %1766 = vmatpush1.msra.mxu0 %v1734
          %1767 = vmatprep.subr.mxu0 0.0
          %1768 = vmatpush1.msra.mxu0 0.0
          %1769 = vmatprep.subr.mxu0 0.0
          %1770 = vmatpush1.msra.mxu0 0.0
          %1771 = vmatprep.subr.mxu0 0.0
          %1772 = vmatpush1.msra.mxu0 0.0
          %1773 = vmatprep.subr.mxu0 0.0
          %1774 = vmatpush1.msra.mxu0 0.0
          %1775 = vmatprep.subr.mxu0 0.0
          %1776 = vmatpush1.msra.mxu0 0.0
          %1777 = vmatprep.subr.mxu0 0.0
          %1778 = vmatpush1.msra.mxu0 0.0
          %1779 = vmatprep.subr.mxu0 0.0
          %1780 = vmatpush1.msra.mxu0 0.0
          %1781 = vmatprep.subr.mxu0 0.0
          %1782 = vmatpush1.msra.mxu0 0.0
          %1783 = vmatprep.subr.mxu0 0.0
          %1784 = vmatpush1.msra.mxu0 0.0
          %1785 = vmatprep.subr.mxu0 0.0
          %1786 = vmatpush1.msra.mxu0 0.0
          %1787 = vmatprep.subr.mxu0 0.0
          %1788 = vmatpush1.msra.mxu0 0.0
          %1789 = vmatprep.subr.mxu0 0.0
          %1790 = vmatpush1.msra.mxu0 0.0
          %1791 = vmatprep.subr.mxu0 0.0
          %1792 = vmatpush1.msra.mxu0 0.0
          %1793 = vmatprep.subr.mxu0 0.0
          %1794 = vmatpush1.msra.mxu0 0.0
          %1795 = vmatprep.subr.mxu0 0.0
          %1796 = vmatpush1.msra.mxu0 0.0
          %1797 = vmatprep.subr.mxu0 0.0
          %1798 = vmatpush1.msra.mxu0 0.0
          %1799 = vmatprep.mubr.f32.mxu0 0.0
          %1800 = vmatmul.mubr.f32.gmra.mrb[0].mxu0 %v1395
          %v1801 = vpop.f32.mrb[0].mxu0
          %v1802 = vadd.f32 0.0, %v1801
          %v1803 = vpop.f32.mrb[0].mxu0
          %1804 = vmatprep.mubr.f32.mxu0 0.0
          %1805 = vmatmul.mubr.f32.gmra.mrb[0].mxu0 %v1398
          %v1806 = vpop.f32.mrb[0].mxu0
          %v1807 = vadd.f32 0.0, %v1806
          %v1808 = vpop.f32.mrb[0].mxu0
          %1809 = vmatprep.mubr.f32.mxu0 0.0
          %1810 = vmatmul.mubr.f32.gmra.mrb[0].mxu0 %v1403
          %v1811 = vpop.f32.mrb[0].mxu0
          %v1812 = vadd.f32 0.0, %v1811
          %v1813 = vpop.f32.mrb[0].mxu0
          %1814 = vmatprep.mubr.f32.mxu0 0.0
          %1815 = vmatmul.mubr.f32.gmra.mrb[0].mxu0 %v1406
          %v1816 = vpop.f32.mrb[0].mxu0
          %v1817 = vadd.f32 0.0, %v1816
          %v1818 = vpop.f32.mrb[0].mxu0
          %1819 = vmatprep.mubr.f32.mxu0 0.0
          %1820 = vmatmul.mubr.f32.gmra.mrb[0].mxu0 %v1411
          %v1821 = vpop.f32.mrb[0].mxu0
          %v1822 = vadd.f32 0.0, %v1821
          %v1823 = vpop.f32.mrb[0].mxu0
          %1824 = vmatprep.mubr.f32.mxu0 0.0
          %1825 = vmatmul.mubr.f32.gmra.mrb[0].mxu0 %v1414
          %v1826 = vpop.f32.mrb[0].mxu0
          %v1827 = vadd.f32 0.0, %v1826
          %v1828 = vpop.f32.mrb[0].mxu0
          %1829 = vmatprep.mubr.f32.mxu0 0.0
          %1830 = vmatmul.mubr.f32.gmra.mrb[0].mxu0 %v1419
          %v1831 = vpop.f32.mrb[0].mxu0
          %v1832 = vadd.f32 0.0, %v1831
          %v1833 = vpop.f32.mrb[0].mxu0
          %1834 = vmatprep.mubr.f32.mxu0 0.0
          %1835 = vmatmul.mubr.f32.gmra.mrb[0].mxu0 %v1422
          %v1836 = vpop.f32.mrb[0].mxu0
          %v1837 = vadd.f32 0.0, %v1836
          %v1838 = vpop.f32.mrb[0].mxu0
          %1839 = vmatprep.mubr.f32.mxu0 0.0
          %1840 = vmatmul.mubr.f32.gmra.mrb[0].mxu0 %v1427
          %v1841 = vpop.f32.mrb[0].mxu0
          %v1842 = vadd.f32 0.0, %v1841
          %v1843 = vpop.f32.mrb[0].mxu0
          %1844 = vmatprep.mubr.f32.mxu0 0.0
          %1845 = vmatmul.mubr.f32.gmra.mrb[0].mxu0 %v1430
          %v1846 = vpop.f32.mrb[0].mxu0
          %v1847 = vadd.f32 0.0, %v1846
          %v1848 = vpop.f32.mrb[0].mxu0
          %1849 = vmatprep.mubr.f32.mxu0 0.0
          %1850 = vmatmul.mubr.f32.gmra.mrb[0].mxu0 %v1435
          %v1851 = vpop.f32.mrb[0].mxu0
          %v1852 = vadd.f32 0.0, %v1851
          %v1853 = vpop.f32.mrb[0].mxu0
          %1854 = vmatprep.mubr.f32.mxu0 0.0
          %1855 = vmatmul.mubr.f32.gmra.mrb[0].mxu0 %v1438
          %v1856 = vpop.f32.mrb[0].mxu0
          %v1857 = vadd.f32 0.0, %v1856
          %v1858 = vpop.f32.mrb[0].mxu0
          %1859 = vmatprep.mubr.f32.mxu0 0.0
          %1860 = vmatmul.mubr.f32.gmra.mrb[0].mxu0 %v1443
          %v1861 = vpop.f32.mrb[0].mxu0
          %v1862 = vadd.f32 0.0, %v1861
          %v1863 = vpop.f32.mrb[0].mxu0
          %1864 = vmatprep.mubr.f32.mxu0 0.0
          %1865 = vmatmul.mubr.f32.gmra.mrb[0].mxu0 %v1446
          %v1866 = vpop.f32.mrb[0].mxu0
          %v1867 = vadd.f32 0.0, %v1866
          %v1868 = vpop.f32.mrb[0].mxu0
          %1869 = vmatprep.mubr.f32.mxu0 0.0
          %1870 = vmatmul.mubr.f32.gmra.mrb[0].mxu0 %v1451
          %v1871 = vpop.f32.mrb[0].mxu0
          %v1872 = vadd.f32 0.0, %v1871
          %v1873 = vpop.f32.mrb[0].mxu0
          %1874 = vmatprep.mubr.f32.mxu0 0.0
          %1875 = vmatmul.mubr.f32.gmra.mrb[0].mxu0 %v1454
          %v1876 = vpop.f32.mrb[0].mxu0
          %v1877 = vadd.f32 0.0, %v1876
          %v1878 = vpop.f32.mrb[0].mxu0
          %1879 = vdwg.mxu0
          %1880 = vmatprep.subr.mxu0 0.0
          %1881 = vmatpush1.msra.mxu0 %v1703
          %1882 = vmatprep.subr.mxu0 0.0
          %1883 = vmatpush1.msra.mxu0 %v1704
          %1884 = vmatprep.subr.mxu0 0.0
          %1885 = vmatpush1.msra.mxu0 %v1705
          %1886 = vmatprep.subr.mxu0 0.0
          %1887 = vmatpush1.msra.mxu0 %v1706
          %1888 = vmatprep.subr.mxu0 0.0
          %1889 = vmatpush1.msra.mxu0 %v1707
          %1890 = vmatprep.subr.mxu0 0.0
          %1891 = vmatpush1.msra.mxu0 %v1708
          %1892 = vmatprep.subr.mxu0 0.0
          %1893 = vmatpush1.msra.mxu0 %v1709
          %1894 = vmatprep.subr.mxu0 0.0
          %1895 = vmatpush1.msra.mxu0 %v1710
          %1896 = vmatprep.subr.mxu0 0.0
          %1897 = vmatpush1.msra.mxu0 %v1711
          %1898 = vmatprep.subr.mxu0 0.0
          %1899 = vmatpush1.msra.mxu0 %v1712
          %1900 = vmatprep.subr.mxu0 0.0
          %1901 = vmatpush1.msra.mxu0 %v1713
          %1902 = vmatprep.subr.mxu0 0.0
          %1903 = vmatpush1.msra.mxu0 %v1714
          %1904 = vmatprep.subr.mxu0 0.0
          %1905 = vmatpush1.msra.mxu0 %v1715
          %1906 = vmatprep.subr.mxu0 0.0
          %1907 = vmatpush1.msra.mxu0 %v1716
          %1908 = vmatprep.subr.mxu0 0.0
          %1909 = vmatpush1.msra.mxu0 %v1717
          %1910 = vmatprep.subr.mxu0 0.0
          %1911 = vmatpush1.msra.mxu0 %v1718
          %1912 = vmatprep.subr.mxu0 0.0
          %1913 = vmatpush1.msra.mxu0 0.0
          %1914 = vmatprep.subr.mxu0 0.0
          %1915 = vmatpush1.msra.mxu0 0.0
          %1916 = vmatprep.subr.mxu0 0.0
          %1917 = vmatpush1.msra.mxu0 0.0
          %1918 = vmatprep.subr.mxu0 0.0
          %1919 = vmatpush1.msra.mxu0 0.0
          %1920 = vmatprep.subr.mxu0 0.0
          %1921 = vmatpush1.msra.mxu0 0.0
          %1922 = vmatprep.subr.mxu0 0.0
          %1923 = vmatpush1.msra.mxu0 0.0
          %1924 = vmatprep.subr.mxu0 0.0
          %1925 = vmatpush1.msra.mxu0 0.0
          %1926 = vmatprep.subr.mxu0 0.0
          %1927 = vmatpush1.msra.mxu0 0.0
          %1928 = vmatprep.subr.mxu0 0.0
          %1929 = vmatpush1.msra.mxu0 0.0
          %1930 = vmatprep.subr.mxu0 0.0
          %1931 = vmatpush1.msra.mxu0 0.0
          %1932 = vmatprep.subr.mxu0 0.0
          %1933 = vmatpush1.msra.mxu0 0.0
          %1934 = vmatprep.subr.mxu0 0.0
          %1935 = vmatpush1.msra.mxu0 0.0
          %1936 = vmatprep.subr.mxu0 0.0
          %1937 = vmatpush1.msra.mxu0 0.0
          %1938 = vmatprep.subr.mxu0 0.0
          %1939 = vmatpush1.msra.mxu0 0.0
          %1940 = vmatprep.subr.mxu0 0.0
          %1941 = vmatpush1.msra.mxu0 0.0
          %1942 = vmatprep.subr.mxu0 0.0
          %1943 = vmatpush1.msra.mxu0 0.0
          %1944 = vmatprep.mubr.f32.mxu0 0.0
          %1945 = vmatmul.mubr.f32.gmra.mrb[0].mxu0 %v1331
          %v1946 = vpop.f32.mrb[0].mxu0
          %v1947 = vadd.f32 %v1802, %v1946
          %v1948 = vpop.f32.mrb[0].mxu0
          %1949 = vmatprep.mubr.f32.mxu0 0.0
          %1950 = vmatmul.mubr.f32.gmra.mrb[0].mxu0 %v1334
          %v1951 = vpop.f32.mrb[0].mxu0
          %v1952 = vadd.f32 %v1807, %v1951
          %v1953 = vpop.f32.mrb[0].mxu0
          %1954 = vmatprep.mubr.f32.mxu0 0.0
          %1955 = vmatmul.mubr.f32.gmra.mrb[0].mxu0 %v1339
          %v1956 = vpop.f32.mrb[0].mxu0
          %v1957 = vadd.f32 %v1812, %v1956
          %v1958 = vpop.f32.mrb[0].mxu0
          %1959 = vmatprep.mubr.f32.mxu0 0.0
          %1960 = vmatmul.mubr.f32.gmra.mrb[0].mxu0 %v1342
          %v1961 = vpop.f32.mrb[0].mxu0
          %v1962 = vadd.f32 %v1817, %v1961
          %v1963 = vpop.f32.mrb[0].mxu0
          %1964 = vmatprep.mubr.f32.mxu0 0.0
          %1965 = vmatmul.mubr.f32.gmra.mrb[0].mxu0 %v1347
          %v1966 = vpop.f32.mrb[0].mxu0
          %v1967 = vadd.f32 %v1822, %v1966
          %v1968 = vpop.f32.mrb[0].mxu0
          %1969 = vmatprep.mubr.f32.mxu0 0.0
          %1970 = vmatmul.mubr.f32.gmra.mrb[0].mxu0 %v1350
          %v1971 = vpop.f32.mrb[0].mxu0
          %v1972 = vadd.f32 %v1827, %v1971
          %v1973 = vpop.f32.mrb[0].mxu0
          %1974 = vmatprep.mubr.f32.mxu0 0.0
          %1975 = vmatmul.mubr.f32.gmra.mrb[0].mxu0 %v1355
          %v1976 = vpop.f32.mrb[0].mxu0
          %v1977 = vadd.f32 %v1832, %v1976
          %v1978 = vpop.f32.mrb[0].mxu0
          %1979 = vmatprep.mubr.f32.mxu0 0.0
          %1980 = vmatmul.mubr.f32.gmra.mrb[0].mxu0 %v1358
          %v1981 = vpop.f32.mrb[0].mxu0
          %v1982 = vadd.f32 %v1837, %v1981
          %v1983 = vpop.f32.mrb[0].mxu0
          %1984 = vmatprep.mubr.f32.mxu0 0.0
          %1985 = vmatmul.mubr.f32.gmra.mrb[0].mxu0 %v1363
          %v1986 = vpop.f32.mrb[0].mxu0
          %v1987 = vadd.f32 %v1842, %v1986
          %v1988 = vpop.f32.mrb[0].mxu0
          %1989 = vmatprep.mubr.f32.mxu0 0.0
          %1990 = vmatmul.mubr.f32.gmra.mrb[0].mxu0 %v1366
          %v1991 = vpop.f32.mrb[0].mxu0
          %v1992 = vadd.f32 %v1847, %v1991
          %v1993 = vpop.f32.mrb[0].mxu0
          %1994 = vmatprep.mubr.f32.mxu0 0.0
          %1995 = vmatmul.mubr.f32.gmra.mrb[0].mxu0 %v1371
          %v1996 = vpop.f32.mrb[0].mxu0
          %v1997 = vadd.f32 %v1852, %v1996
          %v1998 = vpop.f32.mrb[0].mxu0
          %1999 = vmatprep.mubr.f32.mxu0 0.0
          %2000 = vmatmul.mubr.f32.gmra.mrb[0].mxu0 %v1374
          %v2001 = vpop.f32.mrb[0].mxu0
          %v2002 = vadd.f32 %v1857, %v2001
          %v2003 = vpop.f32.mrb[0].mxu0
          %2004 = vmatprep.mubr.f32.mxu0 0.0
          %2005 = vmatmul.mubr.f32.gmra.mrb[0].mxu0 %v1379
          %v2006 = vpop.f32.mrb[0].mxu0
          %v2007 = vadd.f32 %v1862, %v2006
          %v2008 = vpop.f32.mrb[0].mxu0
          %2009 = vmatprep.mubr.f32.mxu0 0.0
          %2010 = vmatmul.mubr.f32.gmra.mrb[0].mxu0 %v1382
          %v2011 = vpop.f32.mrb[0].mxu0
          %v2012 = vadd.f32 %v1867, %v2011
          %v2013 = vpop.f32.mrb[0].mxu0
          %2014 = vmatprep.mubr.f32.mxu0 0.0
          %2015 = vmatmul.mubr.f32.gmra.mrb[0].mxu0 %v1387
          %v2016 = vpop.f32.mrb[0].mxu0
          %v2017 = vadd.f32 %v1872, %v2016
          %v2018 = vpop.f32.mrb[0].mxu0
          %2019 = vmatprep.mubr.f32.mxu0 0.0
          %2020 = vmatmul.mubr.f32.gmra.mrb[0].mxu0 %v1390
          %v2021 = vpop.f32.mrb[0].mxu0
          %v2022 = vadd.f32 %v1877, %v2021
          %v2023 = vpop.f32.mrb[0].mxu0
          %2024 = vdwg.mxu0
          %2026 = vset.pattern.permute.xlu0 0
          %2027 = vperm.xlu0 %2026, %v1458
          %v2028 = vpop.permute.xlu0 %2027
          %2031 = vset.pattern.permute.xlu0 0
          %2032 = vperm.xlu0 %2031, %v1459
          %v2033 = vpop.permute.xlu0 %2032
          %2036 = vset.pattern.permute.xlu0 0
          %2037 = vperm.xlu0 %2036, %v1460
          %v2038 = vpop.permute.xlu0 %2037
          %2041 = vset.pattern.permute.xlu0 0
          %2042 = vperm.xlu0 %2041, %v1461
          %v2043 = vpop.permute.xlu0 %2042
          %2046 = vset.pattern.permute.xlu0 0
          %2047 = vperm.xlu0 %2046, %v1462
          %v2048 = vpop.permute.xlu0 %2047
          %2051 = vset.pattern.permute.xlu0 0
          %2052 = vperm.xlu0 %2051, %v1463
          %v2053 = vpop.permute.xlu0 %2052
          %2056 = vset.pattern.permute.xlu0 0
          %2057 = vperm.xlu0 %2056, %v1464
          %v2058 = vpop.permute.xlu0 %2057
          %2061 = vset.pattern.permute.xlu0 0
          %2062 = vperm.xlu0 %2061, %v1465
          %v2063 = vpop.permute.xlu0 %2062
          %2066 = vset.pattern.permute.xlu0 0
          %2067 = vperm.xlu0 %2066, %v1466
          %v2068 = vpop.permute.xlu0 %2067
          %2071 = vset.pattern.permute.xlu0 0
          %2072 = vperm.xlu0 %2071, %v1467
          %v2073 = vpop.permute.xlu0 %2072
          %2076 = vset.pattern.permute.xlu0 0
          %2077 = vperm.xlu0 %2076, %v1468
          %v2078 = vpop.permute.xlu0 %2077
          %2081 = vset.pattern.permute.xlu0 0
          %2082 = vperm.xlu0 %2081, %v1469
          %v2083 = vpop.permute.xlu0 %2082
          %2086 = vset.pattern.permute.xlu0 0
          %2087 = vperm.xlu0 %2086, %v1470
          %v2088 = vpop.permute.xlu0 %2087
          %2091 = vset.pattern.permute.xlu0 0
          %2092 = vperm.xlu0 %2091, %v1471
          %v2093 = vpop.permute.xlu0 %2092
          %2096 = vset.pattern.permute.xlu0 0
          %2097 = vperm.xlu0 %2096, %v1472
          %v2098 = vpop.permute.xlu0 %2097
          %2101 = vset.pattern.permute.xlu0 0
          %2102 = vperm.xlu0 %2101, %v1473
          %v2103 = vpop.permute.xlu0 %2102
          %v2105 = vmul.f32 %v2028, %v1609
          %v2106 = vmul.f32 %v2033, %v1615
          %v2107 = vmul.f32 %v2038, %v1621
          %v2108 = vmul.f32 %v2043, %v1627
          %v2109 = vmul.f32 %v2048, %v1633
          %v2110 = vmul.f32 %v2053, %v1639
          %v2111 = vmul.f32 %v2058, %v1645
          %v2112 = vmul.f32 %v2063, %v1651
          %v2113 = vmul.f32 %v2068, %v1657
          %v2114 = vmul.f32 %v2073, %v1663
          %v2115 = vmul.f32 %v2078, %v1669
          %v2116 = vmul.f32 %v2083, %v1675
          %v2117 = vmul.f32 %v2088, %v1681
          %v2118 = vmul.f32 %v2093, %v1687
          %v2119 = vmul.f32 %v2098, %v1693
          %v2120 = vmul.f32 %v2103, %v1699
          %v2121 = vadd.f32 %v1947, %v2105
          %v2122 = vadd.f32 %v1952, %v2106
          %v2123 = vadd.f32 %v1957, %v2107
          %v2124 = vadd.f32 %v1962, %v2108
          %v2125 = vadd.f32 %v1967, %v2109
          %v2126 = vadd.f32 %v1972, %v2110
          %v2127 = vadd.f32 %v1977, %v2111
          %v2128 = vadd.f32 %v1982, %v2112
          %v2129 = vadd.f32 %v1987, %v2113
          %v2130 = vadd.f32 %v1992, %v2114
          %v2131 = vadd.f32 %v1997, %v2115
          %v2132 = vadd.f32 %v2002, %v2116
          %v2133 = vadd.f32 %v2007, %v2117
          %v2134 = vadd.f32 %v2012, %v2118
          %v2135 = vadd.f32 %v2017, %v2119
          %v2136 = vadd.f32 %v2022, %v2120
          %2138 = vset.pattern.permute.xlu0 0
          %2139 = vperm.xlu0 %2138, %v1476
          %v2140 = vpop.permute.xlu0 %2139
          %2143 = vset.pattern.permute.xlu0 0
          %2144 = vperm.xlu0 %2143, %v1477
          %v2145 = vpop.permute.xlu0 %2144
          %2148 = vset.pattern.permute.xlu0 0
          %2149 = vperm.xlu0 %2148, %v1478
          %v2150 = vpop.permute.xlu0 %2149
          %2153 = vset.pattern.permute.xlu0 0
          %2154 = vperm.xlu0 %2153, %v1479
          %v2155 = vpop.permute.xlu0 %2154
          %2158 = vset.pattern.permute.xlu0 0
          %2159 = vperm.xlu0 %2158, %v1480
          %v2160 = vpop.permute.xlu0 %2159
          %2163 = vset.pattern.permute.xlu0 0
          %2164 = vperm.xlu0 %2163, %v1481
          %v2165 = vpop.permute.xlu0 %2164
          %2168 = vset.pattern.permute.xlu0 0
          %2169 = vperm.xlu0 %2168, %v1482
          %v2170 = vpop.permute.xlu0 %2169
          %2173 = vset.pattern.permute.xlu0 0
          %2174 = vperm.xlu0 %2173, %v1483
          %v2175 = vpop.permute.xlu0 %2174
          %2178 = vset.pattern.permute.xlu0 0
          %2179 = vperm.xlu0 %2178, %v1484
          %v2180 = vpop.permute.xlu0 %2179
          %2183 = vset.pattern.permute.xlu0 0
          %2184 = vperm.xlu0 %2183, %v1485
          %v2185 = vpop.permute.xlu0 %2184
          %2188 = vset.pattern.permute.xlu0 0
          %2189 = vperm.xlu0 %2188, %v1486
          %v2190 = vpop.permute.xlu0 %2189
          %2193 = vset.pattern.permute.xlu0 0
          %2194 = vperm.xlu0 %2193, %v1487
          %v2195 = vpop.permute.xlu0 %2194
          %2198 = vset.pattern.permute.xlu0 0
          %2199 = vperm.xlu0 %2198, %v1488
          %v2200 = vpop.permute.xlu0 %2199
          %2203 = vset.pattern.permute.xlu0 0
          %2204 = vperm.xlu0 %2203, %v1489
          %v2205 = vpop.permute.xlu0 %2204
          %2208 = vset.pattern.permute.xlu0 0
          %2209 = vperm.xlu0 %2208, %v1490
          %v2210 = vpop.permute.xlu0 %2209
          %2213 = vset.pattern.permute.xlu0 0
          %2214 = vperm.xlu0 %2213, %v1491
          %v2215 = vpop.permute.xlu0 %2214
          %v2217 = vmul.f32 %v2140, %v1611
          %v2218 = vmul.f32 %v2145, %v1617
          %v2219 = vmul.f32 %v2150, %v1623
          %v2220 = vmul.f32 %v2155, %v1629
          %v2221 = vmul.f32 %v2160, %v1635
          %v2222 = vmul.f32 %v2165, %v1641
          %v2223 = vmul.f32 %v2170, %v1647
          %v2224 = vmul.f32 %v2175, %v1653
          %v2225 = vmul.f32 %v2180, %v1659
          %v2226 = vmul.f32 %v2185, %v1665
          %v2227 = vmul.f32 %v2190, %v1671
          %v2228 = vmul.f32 %v2195, %v1677
          %v2229 = vmul.f32 %v2200, %v1683
          %v2230 = vmul.f32 %v2205, %v1689
          %v2231 = vmul.f32 %v2210, %v1695
          %v2232 = vmul.f32 %v2215, %v1701
          %v2233 = vadd.f32 %v2121, %v2217
          %v2234 = vadd.f32 %v2122, %v2218
          %v2235 = vadd.f32 %v2123, %v2219
          %v2236 = vadd.f32 %v2124, %v2220
          %v2237 = vadd.f32 %v2125, %v2221
          %v2238 = vadd.f32 %v2126, %v2222
          %v2239 = vadd.f32 %v2127, %v2223
          %v2240 = vadd.f32 %v2128, %v2224
          %v2241 = vadd.f32 %v2129, %v2225
          %v2242 = vadd.f32 %v2130, %v2226
          %v2243 = vadd.f32 %v2131, %v2227
          %v2244 = vadd.f32 %v2132, %v2228
          %v2245 = vadd.f32 %v2133, %v2229
          %v2246 = vadd.f32 %v2134, %v2230
          %v2247 = vadd.f32 %v2135, %v2231
          %v2248 = vadd.f32 %v2136, %v2232
          %s2249 = scalar_lea.vmem [#allocation3], %s488
          %v2250 = vld [vmem:[%s2249] sm:$0xff]
          %v2251 = vld [vmem:[%s2249 + $0x8] sm:$0xff]
          %v2252 = vld [vmem:[%s2249 + $0x10] sm:$0xff]
          %v2253 = vld [vmem:[%s2249 + $0x18] sm:$0xff]
          %v2254 = vld [vmem:[%s2249 + $0x20] sm:$0xff]
          %v2255 = vld [vmem:[%s2249 + $0x28] sm:$0xff]
          %v2256 = vld [vmem:[%s2249 + $0x30] sm:$0xff]
          %v2257 = vld [vmem:[%s2249 + $0x38] sm:$0xff]
          %v2258 = vld [vmem:[%s2249 + $0x40] sm:$0xff]
          %v2259 = vld [vmem:[%s2249 + $0x48] sm:$0xff]
          %v2260 = vld [vmem:[%s2249 + $0x50] sm:$0xff]
          %v2261 = vld [vmem:[%s2249 + $0x58] sm:$0xff]
          %v2262 = vld [vmem:[%s2249 + $0x60] sm:$0xff]
          %v2263 = vld [vmem:[%s2249 + $0x68] sm:$0xff]
          %v2264 = vld [vmem:[%s2249 + $0x70] sm:$0xff]
          %v2265 = vld [vmem:[%s2249 + $0x78] sm:$0xff]
          %v2266 = vadd.f32 %v2233, %v2250
          %v2267 = vadd.f32 %v2234, %v2251
          %v2268 = vadd.f32 %v2235, %v2252
          %v2269 = vadd.f32 %v2236, %v2253
          %v2270 = vadd.f32 %v2237, %v2254
          %v2271 = vadd.f32 %v2238, %v2255
          %v2272 = vadd.f32 %v2239, %v2256
          %v2273 = vadd.f32 %v2240, %v2257
          %v2274 = vadd.f32 %v2241, %v2258
          %v2275 = vadd.f32 %v2242, %v2259
          %v2276 = vadd.f32 %v2243, %v2260
          %v2277 = vadd.f32 %v2244, %v2261
          %v2278 = vadd.f32 %v2245, %v2262
          %v2279 = vadd.f32 %v2246, %v2263
          %v2280 = vadd.f32 %v2247, %v2264
          %v2281 = vadd.f32 %v2248, %v2265
          %v2282 = vmul.f32 %v768, 0.6666667
          %v2283 = vmul.f32 %v769, 0.6666667
          %v2284 = vmul.f32 %v770, 0.6666667
          %v2285 = vmul.f32 %v771, 0.6666667
          %v2286 = vmul.f32 %v772, 0.6666667
          %v2287 = vmul.f32 %v773, 0.6666667
          %v2288 = vmul.f32 %v774, 0.6666667
          %v2289 = vmul.f32 %v775, 0.6666667
          %v2290 = vmul.f32 %v776, 0.6666667
          %v2291 = vmul.f32 %v777, 0.6666667
          %v2292 = vmul.f32 %v778, 0.6666667
          %v2293 = vmul.f32 %v779, 0.6666667
          %v2294 = vmul.f32 %v780, 0.6666667
          %v2295 = vmul.f32 %v781, 0.6666667
          %v2296 = vmul.f32 %v782, 0.6666667
          %v2297 = vmul.f32 %v783, 0.6666667
          %2299 = vset.pattern.permute.xlu0 0
          %2300 = vperm.xlu0 %2299, %v1494
          %v2301 = vpop.permute.xlu0 %2300
          %2304 = vset.pattern.permute.xlu0 0
          %2305 = vperm.xlu0 %2304, %v1495
          %v2306 = vpop.permute.xlu0 %2305
          %2309 = vset.pattern.permute.xlu0 0
          %2310 = vperm.xlu0 %2309, %v1496
          %v2311 = vpop.permute.xlu0 %2310
          %2314 = vset.pattern.permute.xlu0 0
          %2315 = vperm.xlu0 %2314, %v1497
          %v2316 = vpop.permute.xlu0 %2315
          %2319 = vset.pattern.permute.xlu0 0
          %2320 = vperm.xlu0 %2319, %v1498
          %v2321 = vpop.permute.xlu0 %2320
          %2324 = vset.pattern.permute.xlu0 0
          %2325 = vperm.xlu0 %2324, %v1499
          %v2326 = vpop.permute.xlu0 %2325
          %2329 = vset.pattern.permute.xlu0 0
          %2330 = vperm.xlu0 %2329, %v1500
          %v2331 = vpop.permute.xlu0 %2330
          %2334 = vset.pattern.permute.xlu0 0
          %2335 = vperm.xlu0 %2334, %v1501
          %v2336 = vpop.permute.xlu0 %2335
          %2339 = vset.pattern.permute.xlu0 0
          %2340 = vperm.xlu0 %2339, %v1502
          %v2341 = vpop.permute.xlu0 %2340
          %2344 = vset.pattern.permute.xlu0 0
          %2345 = vperm.xlu0 %2344, %v1503
          %v2346 = vpop.permute.xlu0 %2345
          %2349 = vset.pattern.permute.xlu0 0
          %2350 = vperm.xlu0 %2349, %v1504
          %v2351 = vpop.permute.xlu0 %2350
          %2354 = vset.pattern.permute.xlu0 0
          %2355 = vperm.xlu0 %2354, %v1505
          %v2356 = vpop.permute.xlu0 %2355
          %2359 = vset.pattern.permute.xlu0 0
          %2360 = vperm.xlu0 %2359, %v1506
          %v2361 = vpop.permute.xlu0 %2360
          %2364 = vset.pattern.permute.xlu0 0
          %2365 = vperm.xlu0 %2364, %v1507
          %v2366 = vpop.permute.xlu0 %2365
          %2369 = vset.pattern.permute.xlu0 0
          %2370 = vperm.xlu0 %2369, %v1508
          %v2371 = vpop.permute.xlu0 %2370
          %2374 = vset.pattern.permute.xlu0 0
          %2375 = vperm.xlu0 %2374, %v1509
          %v2376 = vpop.permute.xlu0 %2375
          %v2378 = vmul.f32 %v2301, %v2266
          %v2379 = vmul.f32 %v2306, %v2267
          %v2380 = vmul.f32 %v2311, %v2268
          %v2381 = vmul.f32 %v2316, %v2269
          %v2382 = vmul.f32 %v2321, %v2270
          %v2383 = vmul.f32 %v2326, %v2271
          %v2384 = vmul.f32 %v2331, %v2272
          %v2385 = vmul.f32 %v2336, %v2273
          %v2386 = vmul.f32 %v2341, %v2274
          %v2387 = vmul.f32 %v2346, %v2275
          %v2388 = vmul.f32 %v2351, %v2276
          %v2389 = vmul.f32 %v2356, %v2277
          %v2390 = vmul.f32 %v2361, %v2278
          %v2391 = vmul.f32 %v2366, %v2279
          %v2392 = vmul.f32 %v2371, %v2280
          %v2393 = vmul.f32 %v2376, %v2281
          %v2394 = vadd.f32 %v2282, %v2378
          %v2395 = vadd.f32 %v2283, %v2379
          %v2396 = vadd.f32 %v2284, %v2380
          %v2397 = vadd.f32 %v2285, %v2381
          %v2398 = vadd.f32 %v2286, %v2382
          %v2399 = vadd.f32 %v2287, %v2383
          %v2400 = vadd.f32 %v2288, %v2384
          %v2401 = vadd.f32 %v2289, %v2385
          %v2402 = vadd.f32 %v2290, %v2386
          %v2403 = vadd.f32 %v2291, %v2387
          %v2404 = vadd.f32 %v2292, %v2388
          %v2405 = vadd.f32 %v2293, %v2389
          %v2406 = vadd.f32 %v2294, %v2390
          %v2407 = vadd.f32 %v2295, %v2391
          %v2408 = vadd.f32 %v2296, %v2392
          %v2409 = vadd.f32 %v2297, %v2393
          %2410 = vst [vmem:[%s767] sm:$0xff] %v2394
          %2411 = vst [vmem:[%s767 + $0x8] sm:$0xff] %v2395
          %2412 = vst [vmem:[%s767 + $0x10] sm:$0xff] %v2396
          %2413 = vst [vmem:[%s767 + $0x18] sm:$0xff] %v2397
          %2414 = vst [vmem:[%s767 + $0x20] sm:$0xff] %v2398
          %2415 = vst [vmem:[%s767 + $0x28] sm:$0xff] %v2399
          %2416 = vst [vmem:[%s767 + $0x30] sm:$0xff] %v2400
          %2417 = vst [vmem:[%s767 + $0x38] sm:$0xff] %v2401
          %2418 = vst [vmem:[%s767 + $0x40] sm:$0xff] %v2402
          %2419 = vst [vmem:[%s767 + $0x48] sm:$0xff] %v2403
          %2420 = vst [vmem:[%s767 + $0x50] sm:$0xff] %v2404
          %2421 = vst [vmem:[%s767 + $0x58] sm:$0xff] %v2405
          %2422 = vst [vmem:[%s767 + $0x60] sm:$0xff] %v2406
          %2423 = vst [vmem:[%s767 + $0x68] sm:$0xff] %v2407
          %2424 = vst [vmem:[%s767 + $0x70] sm:$0xff] %v2408
          %2425 = vst [vmem:[%s767 + $0x78] sm:$0xff] %v2409
          %v2426 = vpack.c.bf16 %v2395, %v2394
          %v2427 = vpack.c.bf16 %v2397, %v2396
          %v2428 = vpack.c.bf16 %v2399, %v2398
          %v2429 = vpack.c.bf16 %v2401, %v2400
          %v2430 = vpack.c.bf16 %v2403, %v2402
          %v2431 = vpack.c.bf16 %v2405, %v2404
          %v2432 = vpack.c.bf16 %v2407, %v2406
          %v2433 = vpack.c.bf16 %v2409, %v2408
          %s2434 = sshra.s32 %s766, 4
          %s2435 = sand.u32 %s766, 15
          %s2436 = smul.addr %s2434, 8
          %s2437 = scalar_lea.vmem [#allocation4], %s2436
          %2438 = vst [vmem:[%s2437] sm:$0xff] %v2426
          %2439 = vst [vmem:[%s2437 + $0x8] sm:$0xff] %v2427
          %2440 = vst [vmem:[%s2437 + $0x10] sm:$0xff] %v2428
          %2441 = vst [vmem:[%s2437 + $0x18] sm:$0xff] %v2429
          %2442 = vst [vmem:[%s2437 + $0x20] sm:$0xff] %v2430
          %2443 = vst [vmem:[%s2437 + $0x28] sm:$0xff] %v2431
          %2444 = vst [vmem:[%s2437 + $0x30] sm:$0xff] %v2432
          %2445 = vst [vmem:[%s2437 + $0x38] sm:$0xff] %v2433
          %p2446 = scmp.eq.s32.totalorder %s34, 3
          // Predicated region
          $region93: #{tpu_custom_call.1} parent=91 // pred_check
            %p2447 = pneg %p2446
          $region94: #{tpu_custom_call.1} parent=91 // pred_check_branch
            %2449 = sbr.rel (%p2447) target = $region96
          $region95: #{tpu_custom_call.1} parent=91 // pred_region
            %v2450 = vmax.f32 %v2394, 0.0
            %v2451 = vmax.f32 %v2395, 0.0
            %v2452 = vmax.f32 %v2396, 0.0
            %v2453 = vmax.f32 %v2397, 0.0
            %v2454 = vmax.f32 %v2398, 0.0
            %v2455 = vmax.f32 %v2399, 0.0
            %v2456 = vmax.f32 %v2400, 0.0
            %v2457 = vmax.f32 %v2401, 0.0
            %v2458 = vmax.f32 %v2402, 0.0
            %v2459 = vmax.f32 %v2403, 0.0
            %v2460 = vmax.f32 %v2404, 0.0
            %v2461 = vmax.f32 %v2405, 0.0
            %v2462 = vmax.f32 %v2406, 0.0
            %v2463 = vmax.f32 %v2407, 0.0
            %v2464 = vmax.f32 %v2408, 0.0
            %v2465 = vmax.f32 %v2409, 0.0
            %v2466 = vld [vmem:[#allocation14] sm:$0xff]
            %v2467 = vld [vmem:[#allocation14 + $0x8] sm:$0xff]
            %v2468 = vld [vmem:[#allocation14 + $0x10] sm:$0xff]
            %v2469 = vld [vmem:[#allocation14 + $0x18] sm:$0xff]
            %v2470 = vld [vmem:[#allocation14 + $0x20] sm:$0xff]
            %v2471 = vld [vmem:[#allocation14 + $0x28] sm:$0xff]
            %v2472 = vld [vmem:[#allocation14 + $0x30] sm:$0xff]
            %v2473 = vld [vmem:[#allocation14 + $0x38] sm:$0xff]
            %v2474 = vld [vmem:[#allocation14 + $0x40] sm:$0xff]
            %v2475 = vld [vmem:[#allocation14 + $0x48] sm:$0xff]
            %v2476 = vld [vmem:[#allocation14 + $0x50] sm:$0xff]
            %v2477 = vld [vmem:[#allocation14 + $0x58] sm:$0xff]
            %v2478 = vld [vmem:[#allocation14 + $0x60] sm:$0xff]
            %v2479 = vld [vmem:[#allocation14 + $0x68] sm:$0xff]
            %v2480 = vld [vmem:[#allocation14 + $0x70] sm:$0xff]
            %v2481 = vld [vmem:[#allocation14 + $0x78] sm:$0xff]
            %v2482 = vld [vmem:[%s9] sm:$0x1]
            %v2484 = vlaneseq
            %v2485 = vshrl.u32 %v2484, 7
            %v2486 = vsub.s32 0, %v2485
            %v2487 = vrot.slane %v2482, %v2486
            %2489 = vmatprep.subr.mxu0 0.0
            %2490 = vmatpush1.msra.mxu0 %v2466
            %2491 = vmatprep.subr.mxu0 0.0
            %2492 = vmatpush1.msra.mxu0 %v2467
            %2493 = vmatprep.subr.mxu0 0.0
            %2494 = vmatpush1.msra.mxu0 %v2468
            %2495 = vmatprep.subr.mxu0 0.0
            %2496 = vmatpush1.msra.mxu0 %v2469
            %2497 = vmatprep.subr.mxu0 0.0
            %2498 = vmatpush1.msra.mxu0 %v2470
            %2499 = vmatprep.subr.mxu0 0.0
            %2500 = vmatpush1.msra.mxu0 %v2471
            %2501 = vmatprep.subr.mxu0 0.0
            %2502 = vmatpush1.msra.mxu0 %v2472
            %2503 = vmatprep.subr.mxu0 0.0
            %2504 = vmatpush1.msra.mxu0 %v2473
            %2505 = vmatprep.subr.mxu0 0.0
            %2506 = vmatpush1.msra.mxu0 %v2474
            %2507 = vmatprep.subr.mxu0 0.0
            %2508 = vmatpush1.msra.mxu0 %v2475
            %2509 = vmatprep.subr.mxu0 0.0
            %2510 = vmatpush1.msra.mxu0 %v2476
            %2511 = vmatprep.subr.mxu0 0.0
            %2512 = vmatpush1.msra.mxu0 %v2477
            %2513 = vmatprep.subr.mxu0 0.0
            %2514 = vmatpush1.msra.mxu0 %v2478
            %2515 = vmatprep.subr.mxu0 0.0
            %2516 = vmatpush1.msra.mxu0 %v2479
            %2517 = vmatprep.subr.mxu0 0.0
            %2518 = vmatpush1.msra.mxu0 %v2480
            %2519 = vmatprep.subr.mxu0 0.0
            %2520 = vmatpush1.msra.mxu0 %v2481
            %2521 = vmatprep.subr.mxu0 0.0
            %2522 = vmatpush1.msra.mxu0 0.0
            %2523 = vmatprep.subr.mxu0 0.0
            %2524 = vmatpush1.msra.mxu0 0.0
            %2525 = vmatprep.subr.mxu0 0.0
            %2526 = vmatpush1.msra.mxu0 0.0
            %2527 = vmatprep.subr.mxu0 0.0
            %2528 = vmatpush1.msra.mxu0 0.0
            %2529 = vmatprep.subr.mxu0 0.0
            %2530 = vmatpush1.msra.mxu0 0.0
            %2531 = vmatprep.subr.mxu0 0.0
            %2532 = vmatpush1.msra.mxu0 0.0
            %2533 = vmatprep.subr.mxu0 0.0
            %2534 = vmatpush1.msra.mxu0 0.0
            %2535 = vmatprep.subr.mxu0 0.0
            %2536 = vmatpush1.msra.mxu0 0.0
            %2537 = vmatprep.subr.mxu0 0.0
            %2538 = vmatpush1.msra.mxu0 0.0
            %2539 = vmatprep.subr.mxu0 0.0
            %2540 = vmatpush1.msra.mxu0 0.0
            %2541 = vmatprep.subr.mxu0 0.0
            %2542 = vmatpush1.msra.mxu0 0.0
            %2543 = vmatprep.subr.mxu0 0.0
            %2544 = vmatpush1.msra.mxu0 0.0
            %2545 = vmatprep.subr.mxu0 0.0
            %2546 = vmatpush1.msra.mxu0 0.0
            %2547 = vmatprep.subr.mxu0 0.0
            %2548 = vmatpush1.msra.mxu0 0.0
            %2549 = vmatprep.subr.mxu0 0.0
            %2550 = vmatpush1.msra.mxu0 0.0
            %2551 = vmatprep.subr.mxu0 0.0
            %2552 = vmatpush1.msra.mxu0 0.0
            %2553 = vmatprep.mubr.f32.mxu0 0.0
            %2554 = vmatmul.mubr.f32.gmra.mrb[0].mxu0 %v2450
            %v2555 = vpop.f32.mrb[0].mxu0
            %v2556 = vadd.f32 %v2487, %v2555
            %v2557 = vpop.f32.mrb[0].mxu0
            %2558 = vmatprep.mubr.f32.mxu0 0.0
            %2559 = vmatmul.mubr.f32.gmra.mrb[0].mxu0 %v2451
            %v2560 = vpop.f32.mrb[0].mxu0
            %v2561 = vadd.f32 %v2487, %v2560
            %v2562 = vpop.f32.mrb[0].mxu0
            %2563 = vmatprep.mubr.f32.mxu0 0.0
            %2564 = vmatmul.mubr.f32.gmra.mrb[0].mxu0 %v2452
            %v2565 = vpop.f32.mrb[0].mxu0
            %v2566 = vadd.f32 %v2487, %v2565
            %v2567 = vpop.f32.mrb[0].mxu0
            %2568 = vmatprep.mubr.f32.mxu0 0.0
            %2569 = vmatmul.mubr.f32.gmra.mrb[0].mxu0 %v2453
            %v2570 = vpop.f32.mrb[0].mxu0
            %v2571 = vadd.f32 %v2487, %v2570
            %v2572 = vpop.f32.mrb[0].mxu0
            %2573 = vmatprep.mubr.f32.mxu0 0.0
            %2574 = vmatmul.mubr.f32.gmra.mrb[0].mxu0 %v2454
            %v2575 = vpop.f32.mrb[0].mxu0
            %v2576 = vadd.f32 %v2487, %v2575
            %v2577 = vpop.f32.mrb[0].mxu0
            %2578 = vmatprep.mubr.f32.mxu0 0.0
            %2579 = vmatmul.mubr.f32.gmra.mrb[0].mxu0 %v2455
            %v2580 = vpop.f32.mrb[0].mxu0
            %v2581 = vadd.f32 %v2487, %v2580
            %v2582 = vpop.f32.mrb[0].mxu0
            %2583 = vmatprep.mubr.f32.mxu0 0.0
            %2584 = vmatmul.mubr.f32.gmra.mrb[0].mxu0 %v2456
            %v2585 = vpop.f32.mrb[0].mxu0
            %v2586 = vadd.f32 %v2487, %v2585
            %v2587 = vpop.f32.mrb[0].mxu0
            %2588 = vmatprep.mubr.f32.mxu0 0.0
            %2589 = vmatmul.mubr.f32.gmra.mrb[0].mxu0 %v2457
            %v2590 = vpop.f32.mrb[0].mxu0
            %v2591 = vadd.f32 %v2487, %v2590
            %v2592 = vpop.f32.mrb[0].mxu0
            %2593 = vmatprep.mubr.f32.mxu0 0.0
            %2594 = vmatmul.mubr.f32.gmra.mrb[0].mxu0 %v2458
            %v2595 = vpop.f32.mrb[0].mxu0
            %v2596 = vadd.f32 %v2487, %v2595
            %v2597 = vpop.f32.mrb[0].mxu0
            %2598 = vmatprep.mubr.f32.mxu0 0.0
            %2599 = vmatmul.mubr.f32.gmra.mrb[0].mxu0 %v2459
            %v2600 = vpop.f32.mrb[0].mxu0
            %v2601 = vadd.f32 %v2487, %v2600
            %v2602 = vpop.f32.mrb[0].mxu0
            %2603 = vmatprep.mubr.f32.mxu0 0.0
            %2604 = vmatmul.mubr.f32.gmra.mrb[0].mxu0 %v2460
            %v2605 = vpop.f32.mrb[0].mxu0
            %v2606 = vadd.f32 %v2487, %v2605
            %v2607 = vpop.f32.mrb[0].mxu0
            %2608 = vmatprep.mubr.f32.mxu0 0.0
            %2609 = vmatmul.mubr.f32.gmra.mrb[0].mxu0 %v2461
            %v2610 = vpop.f32.mrb[0].mxu0
            %v2611 = vadd.f32 %v2487, %v2610
            %v2612 = vpop.f32.mrb[0].mxu0
            %2613 = vmatprep.mubr.f32.mxu0 0.0
            %2614 = vmatmul.mubr.f32.gmra.mrb[0].mxu0 %v2462
            %v2615 = vpop.f32.mrb[0].mxu0
            %v2616 = vadd.f32 %v2487, %v2615
            %v2617 = vpop.f32.mrb[0].mxu0
            %2618 = vmatprep.mubr.f32.mxu0 0.0
            %2619 = vmatmul.mubr.f32.gmra.mrb[0].mxu0 %v2463
            %v2620 = vpop.f32.mrb[0].mxu0
            %v2621 = vadd.f32 %v2487, %v2620
            %v2622 = vpop.f32.mrb[0].mxu0
            %2623 = vmatprep.mubr.f32.mxu0 0.0
            %2624 = vmatmul.mubr.f32.gmra.mrb[0].mxu0 %v2464
            %v2625 = vpop.f32.mrb[0].mxu0
            %v2626 = vadd.f32 %v2487, %v2625
            %v2627 = vpop.f32.mrb[0].mxu0
            %2628 = vmatprep.mubr.f32.mxu0 0.0
            %2629 = vmatmul.mubr.f32.gmra.mrb[0].mxu0 %v2465
            %v2630 = vpop.f32.mrb[0].mxu0
            %v2631 = vadd.f32 %v2487, %v2630
            %v2632 = vpop.f32.mrb[0].mxu0
            %2633 = vdwg.mxu0
            %2634 = vst [vmem:[%s478] sm:$0xff] %v2556
            %2635 = vst [vmem:[%s478 + $0x8] sm:$0xff] %v2561
            %2636 = vst [vmem:[%s478 + $0x10] sm:$0xff] %v2566
            %2637 = vst [vmem:[%s478 + $0x18] sm:$0xff] %v2571
            %2638 = vst [vmem:[%s478 + $0x20] sm:$0xff] %v2576
            %2639 = vst [vmem:[%s478 + $0x28] sm:$0xff] %v2581
            %2640 = vst [vmem:[%s478 + $0x30] sm:$0xff] %v2586
            %2641 = vst [vmem:[%s478 + $0x38] sm:$0xff] %v2591
            %2642 = vst [vmem:[%s478 + $0x40] sm:$0xff] %v2596
            %2643 = vst [vmem:[%s478 + $0x48] sm:$0xff] %v2601
            %2644 = vst [vmem:[%s478 + $0x50] sm:$0xff] %v2606
            %2645 = vst [vmem:[%s478 + $0x58] sm:$0xff] %v2611
            %2646 = vst [vmem:[%s478 + $0x60] sm:$0xff] %v2616
            %2647 = vst [vmem:[%s478 + $0x68] sm:$0xff] %v2621
            %2648 = vst [vmem:[%s478 + $0x70] sm:$0xff] %v2626
            %2649 = vst [vmem:[%s478 + $0x78] sm:$0xff] %v2631
          $region96: #{tpu_custom_call.1} parent=91 // pred_fallthru
            _
        $region92: #{tpu_custom_call.1} parent=59 // pred_fallthru
          _
        %s2650 = sand.u32 %s277, 1
        %s2651 = scalar_lea.sflag [#allocation7], %s2650
        %s2652 = sand.u32 %s277, 1
        %s2653 = smul.addr %s2652, 128
        %s2654 = scalar_lea.vmem [#allocation16], %s2653
        // Predicated region
        $region97: #{tpu_custom_call.1} parent=59 // pred_check
          %p2655 = pneg %p287
        $region98: #{tpu_custom_call.1} parent=59 // pred_check_branch
          %2657 = sbr.rel (%p2655) target = $region100
        $region99: #{tpu_custom_call.1} parent=59 // pred_region
          %p2658 = scmp.eq.s32.totalorder %s34, 3
          %s2659 = scalar_select %p2658, %s35, 0
          %s2660 = smul.u32 16, %s2659
          %s2662 = ssub.s32 2048, 2048
          %2663 = vsyncadd %s2651, %s2662
          %s2664 = smul.addr %s2660, 128
          %s2665 = scalar_lea.hbm %s10, %s2664
          %s2666 = sshll.u32 %s2654, 4
          %s2667 = int_to_ptr.vmem [resolvable:$true] %s2666
          %2672 = dma.vmem_to_hbm [thread:$0]  %s2667, 2048, %s2665, %s2651, 128, 128, 8
        $region100: #{tpu_custom_call.1} parent=59 // pred_fallthru
          _
      $region60: #{tpu_custom_call.1} parent=5 // pred_fallthru
        _
      %p2673 = scmp.le.s32.totalorder 2, %s25
      // Predicated region
      $region101: #{tpu_custom_call.1} parent=5 // pred_check
        %p2674 = pneg %p2673
      $region102: #{tpu_custom_call.1} parent=5 // pred_check_branch
        %2676 = sbr.rel (%p2674) target = $region104
      $region103: #{tpu_custom_call.1} parent=5 // pred_region
        %s2677 = ssub.s32 %s25, 2
        // Predicated region
        $region105: #{tpu_custom_call.1} parent=103 // pred_check
          %p2678 = pneg %p293
        $region106: #{tpu_custom_call.1} parent=103 // pred_check_branch
          %2680 = sbr.rel (%p2678) target = $region108
        $region107: #{tpu_custom_call.1} parent=103 // pred_region
          %s2681 = sand.u32 %s278, 1
          %s2682 = scalar_lea.sflag [#allocation7], %s2681
          %s2683 = sand.u32 %s278, 1
          %s2684 = smul.addr %s2683, 128
          %s2685 = scalar_lea.vmem [#allocation16], %s2684
          %2686 = dma.done %s2682, 2048
        $region108: #{tpu_custom_call.1} parent=103 // pred_fallthru
          _
      $region104: #{tpu_custom_call.1} parent=5 // pred_fallthru
        _
    $region6: #{tpu_custom_call.1} parent=1 // loop_footer
      %s29 = sadd.s32 1, %s25
    $region7: #{tpu_custom_call.1} parent=1 // loop_footer_branch
      %24 = sbr.rel target = $region3
    $region8: #{tpu_custom_call.1} parent=1 // loop_exit
      _
    %2687 = vsyncpa [#allocation6], 1
    %s2688 = scalar_lea.sflag [#allocation6], 1
    %2689 = vsyncpa %s2688, 1
    %2690 = vsyncpa [#allocation9], 1
    %2691 = vsyncpa [#allocation12], 1
    %2692 = vsyncpa [#allocation15], 1
    %2693 = vsyncpa [#allocation7], 1
    %s2694 = scalar_lea.sflag [#allocation7], 1
    %2695 = vsyncpa %s2694, 1

</llo_original>
